<compile_context>
chip_gen: v6e
topology: v6e:2x2x1
jax: 0.10.0
libtpu: 0.0.40
codegen_flags: <defaults>
</compile_context>

<pallas_src>
import functools
import math

import jax
import jax.numpy as jnp
from jax import lax
from jax.experimental import pallas as pl
from jax.experimental.pallas import tpu as pltpu


# ----------------------------------------------------------------------------
# Fused transformer-block kernel (one invocation == one batch element)
# ----------------------------------------------------------------------------
def _layer_kernel(
    x_ref, cos_ref, sin_ref,
    ln1_ref, wqkv_ref, bqkv_ref, wo_ref,
    ln2_ref, wgu_ref, wd_ref,
    o_ref,
    *, nH, nKV, hd, eps,
):
    x = x_ref[0]                         # (T, H) float32 residual stream
    T = x.shape[0]
    half = hd // 2
    rep = nH // nKV
    Dq = nH * hd
    Dkv = nKV * hd
    I = wgu_ref.shape[1] // 2

    def rmsnorm(v, w):                   # f32 stats (no bf16 VPU/EUP on v5e)
        var = jnp.mean(v * v, axis=-1, keepdims=True)
        return (v * lax.rsqrt(var + eps)) * w

    # ---------------- attention block ----------------
    h = rmsnorm(x, ln1_ref[...]).astype(jnp.bfloat16)

    # Single fused QKV matmul (softmax scale pre-folded into the q columns).
    qkv = jnp.dot(h, wqkv_ref[...], preferred_element_type=jnp.float32) + bqkv_ref[...]

    q = jnp.swapaxes(qkv[:, :Dq].reshape(T, nH, hd), 0, 1)            # (nH, T, hd)
    k = jnp.swapaxes(qkv[:, Dq:Dq + Dkv].reshape(T, nKV, hd), 0, 1)   # (nKV, T, hd)
    v = jnp.swapaxes(qkv[:, Dq + Dkv:].reshape(T, nKV, hd), 0, 1)     # (nKV, T, hd)

    cos = cos_ref[...]                   # (T, hd)
    sin = sin_ref[...]                   # (T, hd), rotate_half sign pre-folded

    def rope(u):                         # u*cos + rotate_half(u)*sin via lane roll (XLU)
        return u * cos + pltpu.roll(u, shift=half, axis=2) * sin

    q = rope(q)
    k = rope(k)

    # GQA: expand KV groups to per-head via a cheap leading-dim broadcast.
    k = jnp.broadcast_to(k[:, None], (nKV, rep, T, hd)).reshape(nH, T, hd)
    v = jnp.broadcast_to(v[:, None], (nKV, rep, T, hd)).reshape(nH, T, hd)

    # Head-batched score matmul, causal mask, softmax stats in f32.
    s = jnp.einsum('htd,hsd->hts',
                   q.astype(jnp.bfloat16), k.astype(jnp.bfloat16),
                   preferred_element_type=jnp.float32)                # (nH, T, T)
    qi = lax.broadcasted_iota(jnp.int32, (T, T), 0)
    ki = lax.broadcasted_iota(jnp.int32, (T, T), 1)
    s = jnp.where(ki <= qi, s, -1e30)

    m = jnp.max(s, axis=-1, keepdims=True)
    p = jnp.exp(s - m)
    l = jnp.sum(p, axis=-1, keepdims=True)

    o3 = jnp.einsum('hts,hsd->htd',
                    p.astype(jnp.bfloat16), v.astype(jnp.bfloat16),
                    preferred_element_type=jnp.float32)               # (nH, T, hd)
    o3 = o3 * pl.reciprocal(l, approx=True)                           # EUP slot

    attn = jnp.swapaxes(o3, 0, 1).reshape(T, Dq)                      # (T, H)
    o = jnp.dot(attn.astype(jnp.bfloat16), wo_ref[...],               # o-proj (no bias)
                preferred_element_type=jnp.float32)
    x1 = x + o                                                        # fused residual

    # ---------------- MLP block (fused gate/up) ----------------
    h2 = rmsnorm(x1, ln2_ref[...]).astype(jnp.bfloat16)
    gu = jnp.dot(h2, wgu_ref[...], preferred_element_type=jnp.float32)
    g = gu[:, :I]
    u = gu[:, I:]
    hidden = (g * jax.nn.sigmoid(g)) * u                              # SiLU in f32
    d = jnp.dot(hidden.astype(jnp.bfloat16), wd_ref[...],
                preferred_element_type=jnp.float32)

    o_ref[0] = x1 + d                                                 # fused residual


def layer_forward(x, cos, sin, layer, cfg, *, eps=1e-6):
    # NOTE: eps hard-codes rms_norm_eps=1e-6 (Qwen2.5 default).
    B, T, H = x.shape
    nH = cfg["num_attention_heads"]
    nKV = cfg["num_key_value_heads"]
    hd = H // nH

    def full(a):
        return pl.BlockSpec(a.shape, lambda b, _nd=a.ndim: (0,) * _nd)

    kernel = functools.partial(_layer_kernel, nH=nH, nKV=nKV, hd=hd, eps=eps)

    return pl.pallas_call(
        kernel,
        out_shape=jax.ShapeDtypeStruct((B, T, H), jnp.float32),
        grid=(B,),
        in_specs=[
            pl.BlockSpec((1, T, H), lambda b: (b, 0, 0)),    # x (per-batch block)
            full(cos), full(sin),                            # shared RoPE tables
            full(layer["ln1"]),
            full(layer["wqkv"]), full(layer["bqkv"]),
            full(layer["wo"]),
            full(layer["ln2"]),
            full(layer["wgu"]), full(layer["wd"]),
        ],
        out_specs=pl.BlockSpec((1, T, H), lambda b: (b, 0, 0)),
        compiler_params=pltpu.CompilerParams(
            dimension_semantics=("parallel",),
            vmem_limit_bytes=48 * 1024 * 1024),
    )(x, cos, sin,
      layer["ln1"], layer["wqkv"], layer["bqkv"], layer["wo"],
      layer["ln2"], layer["wgu"], layer["wd"])


# ----------------------------------------------------------------------------
# Fused final-norm + tied lm_head kernel (vocab-tiled)
# ----------------------------------------------------------------------------
def _head_kernel(x_ref, wn_ref, lmh_ref, o_ref, *, eps):
    x = x_ref[0]                                             # (T, H) f32
    var = jnp.mean(x * x, axis=-1, keepdims=True)
    h = (x * lax.rsqrt(var + eps)) * wn_ref[...]
    o_ref[0] = jnp.dot(h.astype(jnp.bfloat16), lmh_ref[...],
                       preferred_element_type=jnp.float32)


def head_forward(x, wnorm, lm_head_t, *, eps=1e-6, tv=512):
    B, T, H = x.shape
    V = lm_head_t.shape[1]
    if V < tv or V % tv != 0:
        tv = V          # toy vocab: single full block; real vocab streams in tv tiles
    return pl.pallas_call(
        functools.partial(_head_kernel, eps=eps),
        out_shape=jax.ShapeDtypeStruct((B, T, V), jnp.float32),
        grid=(B, V // tv),
        in_specs=[
            pl.BlockSpec((1, T, H), lambda b, v: (b, 0, 0)),
            pl.BlockSpec((1, H), lambda b, v: (0, 0)),
            pl.BlockSpec((H, tv), lambda b, v: (0, v)),
        ],
        out_specs=pl.BlockSpec((1, T, tv), lambda b, v: (b, 0, v)),
        compiler_params=pltpu.CompilerParams(
            dimension_semantics=("parallel", "parallel"),
            vmem_limit_bytes=48 * 1024 * 1024),
    )(x, wnorm, lm_head_t)


# ----------------------------------------------------------------------------
# Parameters (deterministic, synthetic).  Matmul weights packed + bf16.
# ----------------------------------------------------------------------------
def init_params(key, cfg):
    H = cfg["hidden_size"]
    I = cfg["intermediate_size"]
    V = cfg["vocab_size"]
    nH = cfg["num_attention_heads"]
    nKV = cfg["num_key_value_heads"]
    hd = H // nH
    L = cfg["num_hidden_layers"]
    scale = 1.0 / math.sqrt(hd)          # softmax scale, folded into q weights

    def nrm(k, shape):
        return 0.02 * jax.random.normal(k, shape, dtype=jnp.float32)

    keys = jax.random.split(key, 1 + 10 * L)   # embed + 10 tensors per layer
    it = iter(keys)

    embed = nrm(next(it), (V, H))              # f32 (gather + residual precision)
    layers = []
    for _ in range(L):
        wq = nrm(next(it), (H, nH * hd));  bq = nrm(next(it), (1, nH * hd))
        wk = nrm(next(it), (H, nKV * hd)); bk = nrm(next(it), (1, nKV * hd))
        wv = nrm(next(it), (H, nKV * hd)); bv = nrm(next(it), (1, nKV * hd))
        wo = nrm(next(it), (H, H))
        wg = nrm(next(it), (H, I))
        wu = nrm(next(it), (H, I))
        wd = nrm(next(it), (I, H))
        layers.append(
            dict(
                ln1=jnp.ones((1, H), jnp.float32),
                # fused QKV (scale folded into q part), single fused bias
                wqkv=jnp.concatenate([wq * scale, wk, wv], axis=1).astype(jnp.bfloat16),
                bqkv=jnp.concatenate([bq * scale, bk, bv], axis=1),
                wo=wo.astype(jnp.bfloat16),
                ln2=jnp.ones((1, H), jnp.float32),
                # fused gate/up
                wgu=jnp.concatenate([wg, wu], axis=1).astype(jnp.bfloat16),
                wd=wd.astype(jnp.bfloat16),
            )
        )
    # tie_word_embeddings=True -> lm_head weight is the embedding matrix (transposed)
    return dict(
        embed=embed,
        layers=layers,
        final_norm=jnp.ones((1, H), jnp.float32),
        lm_head_t=embed.T.astype(jnp.bfloat16),  # (H, V) bf16 MXU operand
    )


# ----------------------------------------------------------------------------
# Forward pass (embedding gather + RoPE tables in glue, everything else fused)
# ----------------------------------------------------------------------------
def qwen_forward(params, input_ids, cfg):
    B, T = input_ids.shape
    H = cfg["hidden_size"]
    nH = cfg["num_attention_heads"]
    hd = H // nH

    # token embedding (gather stays in glue)
    x = jnp.take(params["embed"], input_ids, axis=0)        # (B, T, H) f32

    # rotary tables, position_ids = arange(T) for every batch -> single (T, hd).
    # rotate_half(u)*sin == roll(u, hd/2)*concat([-sin_h, sin_h]) -> fold the
    # sign into the sin table so the kernel only needs one roll + two FMAs.
    pos = jnp.arange(T, dtype=jnp.float32)
    inv_freq = 1.0 / (
        cfg["rope_theta"] ** (jnp.arange(0, hd, 2, dtype=jnp.float32) / hd))
    freqs = pos[:, None] * inv_freq[None, :]                 # (T, hd/2)
    cos = jnp.cos(jnp.concatenate([freqs, freqs], axis=-1))  # (T, hd)
    sin_h = jnp.sin(freqs)
    sin = jnp.concatenate([-sin_h, sin_h], axis=-1)          # (T, hd), signed

    for layer in params["layers"]:
        x = layer_forward(x, cos, sin, layer, cfg)

    return head_forward(x, params["final_norm"], params["lm_head_t"])


# TODO(synk): generate() (top-k sampling / multinomial loop) is host-side control
# flow, not implemented as a Pallas kernel.


# ----------------------------------------------------------------------------
if __name__ == "__main__":
    cfg = dict(
        max_position_embeddings=16,
        vocab_size=64,
        hidden_size=32,
        num_attention_heads=4,
        num_key_value_heads=2,
        intermediate_size=64,
        num_hidden_layers=2,
        rope_theta=10000.0,
    )

    key = jax.random.PRNGKey(0)
    pkey, ikey = jax.random.split(key)
    params = init_params(pkey, cfg)

    B, T = 2, 8
    input_ids = jax.random.randint(ikey, (B, T), 0, cfg["vocab_size"], dtype=jnp.int32)

    fwd = jax.jit(lambda p, ids: qwen_forward(p, ids, cfg))
    logits = fwd(params, input_ids)
    logits = jax.block_until_ready(logits)

    assert logits.shape == (B, T, cfg["vocab_size"])
    assert bool(jnp.all(jnp.isfinite(logits)))
    print("KERNEL_OK")
</pallas_src>

<mosaic_0001>
module attributes {stable_mosaic.version = 11 : i64} {
  func.func @_head_kernel(%arg0: i32, %arg1: i32, %arg2: memref<1x8x32xf32, #tpu.memory_space<vmem>>, %arg3: memref<1x32xf32, #tpu.memory_space<vmem>>, %arg4: memref<32x64xbf16, #tpu.memory_space<vmem>>, %arg5: memref<1x8x64xf32, #tpu.memory_space<vmem>>) attributes {dimension_semantics = [#tpu.dimension_semantics<parallel>, #tpu.dimension_semantics<parallel>], iteration_bounds = array<i64: 2, 1>, scalar_prefetch = 0 : i64, scratch_operands = 0 : i64, tpu.core_type = #tpu.core_type<tc>, window_params = [{transform_indices = @transform_0, window_bounds = array<i64: 1, 8, 32>}, {pipeline_mode = #tpu.pipeline_mode<synchronous>, transform_indices = @transform_1, window_bounds = array<i64: 1, 32>}, {transform_indices = @transform_2, window_bounds = array<i64: 32, 64>}, {transform_indices = @transform_3, window_bounds = array<i64: 1, 8, 64>}]} {
    %c0 = arith.constant 0 : index
    %c0_0 = arith.constant 0 : index
    %c0_1 = arith.constant 0 : index
    %0 = vector.load %arg2[%c0, %c0_0, %c0_1] : memref<1x8x32xf32, #tpu.memory_space<vmem>>, vector<1x8x32xf32>
    %1 = vector.shape_cast %0 : vector<1x8x32xf32> to vector<8x32xf32>
    %2 = arith.mulf %1, %1 : vector<8x32xf32>
    %cst = arith.constant dense<0.000000e+00> : vector<8xf32>
    %3 = vector.multi_reduction <add>, %2, %cst [1] : vector<8x32xf32> to vector<8xf32>
    %4 = vector.shape_cast %3 : vector<8xf32> to vector<8x1xf32>
    %cst_2 = arith.constant 3.200000e+01 : f32
    %5 = vector.broadcast %cst_2 : f32 to vector<8x1xf32>
    %6 = arith.divf %4, %5 : vector<8x1xf32>
    %cst_3 = arith.constant 9.99999997E-7 : f32
    %7 = vector.broadcast %cst_3 : f32 to vector<8x1xf32>
    %8 = arith.addf %6, %7 : vector<8x1xf32>
    %9 = math.rsqrt %8 : vector<8x1xf32>
    %10 = vector.broadcast %9 : vector<8x1xf32> to vector<8x32xf32>
    %11 = arith.mulf %1, %10 : vector<8x32xf32>
    %c0_4 = arith.constant 0 : index
    %c0_5 = arith.constant 0 : index
    %12 = vector.load %arg3[%c0_4, %c0_5] : memref<1x32xf32, #tpu.memory_space<vmem>>, vector<1x32xf32>
    %13 = vector.broadcast %12 : vector<1x32xf32> to vector<8x32xf32>
    %14 = arith.mulf %11, %13 : vector<8x32xf32>
    %15 = arith.truncf %14 : vector<8x32xf32> to vector<8x32xbf16>
    %c0_6 = arith.constant 0 : index
    %c0_7 = arith.constant 0 : index
    %16 = vector.load %arg4[%c0_6, %c0_7] : memref<32x64xbf16, #tpu.memory_space<vmem>>, vector<32x64xbf16>
    %cst_8 = arith.constant dense<0.000000e+00> : vector<8x64xf32>
    %17 = tpu.matmul %15, %16, %cst_8 {dimension_numbers = #tpu.dot_dimension_numbers<[1], [0], [0], [1], [0, 0, 1, 1], [], []>} : vector<8x32xbf16>, vector<32x64xbf16>, vector<8x64xf32> -> vector<8x64xf32>
    %c0_9 = arith.constant 0 : index
    %c0_10 = arith.constant 0 : index
    %c0_11 = arith.constant 0 : index
    %18 = vector.load %arg5[%c0_9, %c0_10, %c0_11] : memref<1x8x64xf32, #tpu.memory_space<vmem>>, vector<1x8x64xf32>
    %19 = vector.shape_cast %18 : vector<1x8x64xf32> to vector<8x64xf32>
    %20 = vector.shape_cast %17 : vector<8x64xf32> to vector<1x8x64xf32>
    tpu.vector_store %arg5[%c0_9, %c0_10, %c0_11], %20 {strides = array<i32>} : memref<1x8x64xf32, #tpu.memory_space<vmem>>, vector<1x8x64xf32>,
    return
  }
  func.func @transform_0(%arg0: i32, %arg1: i32) -> (i32, i32, i32) {
    %c0_i32 = arith.constant 0 : i32
    %c0_i32_0 = arith.constant 0 : i32
    %c0_i32_1 = arith.constant 0 : i32
    return %arg0, %c0_i32, %c0_i32_0 : i32, i32, i32
  }
  func.func @transform_1(%arg0: i32, %arg1: i32) -> (i32, i32) {
    %c0_i32 = arith.constant 0 : i32
    %c0_i32_0 = arith.constant 0 : i32
    %c0_i32_1 = arith.constant 0 : i32
    return %c0_i32, %c0_i32_0 : i32, i32
  }
  func.func @transform_2(%arg0: i32, %arg1: i32) -> (i32, i32) {
    %c0_i32 = arith.constant 0 : i32
    %c0_i32_0 = arith.constant 0 : i32
    return %c0_i32, %arg1 : i32, i32
  }
  func.func @transform_3(%arg0: i32, %arg1: i32) -> (i32, i32, i32) {
    %c0_i32 = arith.constant 0 : i32
    %c0_i32_0 = arith.constant 0 : i32
    return %arg0, %c0_i32, %arg1 : i32, i32, i32
  }
}

module attributes {stable_mosaic.version = 11 : i64} {
  func.func @_layer_kernel(%arg0: i32, %arg1: memref<1x8x32xf32, #tpu.memory_space<vmem>>, %arg2: memref<8x8xf32, #tpu.memory_space<vmem>>, %arg3: memref<8x8xf32, #tpu.memory_space<vmem>>, %arg4: memref<1x32xf32, #tpu.memory_space<vmem>>, %arg5: memref<32x64xbf16, #tpu.memory_space<vmem>>, %arg6: memref<1x64xf32, #tpu.memory_space<vmem>>, %arg7: memref<32x32xbf16, #tpu.memory_space<vmem>>, %arg8: memref<1x32xf32, #tpu.memory_space<vmem>>, %arg9: memref<32x128xbf16, #tpu.memory_space<vmem>>, %arg10: memref<64x32xbf16, #tpu.memory_space<vmem>>, %arg11: memref<1x8x32xf32, #tpu.memory_space<vmem>>) attributes {dimension_semantics = [#tpu.dimension_semantics<parallel>], iteration_bounds = array<i64: 2>, scalar_prefetch = 0 : i64, scratch_operands = 0 : i64, tpu.core_type = #tpu.core_type<tc>, window_params = [{transform_indices = @transform_0, window_bounds = array<i64: 1, 8, 32>}, {pipeline_mode = #tpu.pipeline_mode<synchronous>, transform_indices = @transform_1, window_bounds = array<i64: 8, 8>}, {pipeline_mode = #tpu.pipeline_mode<synchronous>, transform_indices = @transform_2, window_bounds = array<i64: 8, 8>}, {pipeline_mode = #tpu.pipeline_mode<synchronous>, transform_indices = @transform_3, window_bounds = array<i64: 1, 32>}, {pipeline_mode = #tpu.pipeline_mode<synchronous>, transform_indices = @transform_4, window_bounds = array<i64: 32, 64>}, {pipeline_mode = #tpu.pipeline_mode<synchronous>, transform_indices = @transform_5, window_bounds = array<i64: 1, 64>}, {pipeline_mode = #tpu.pipeline_mode<synchronous>, transform_indices = @transform_6, window_bounds = array<i64: 32, 32>}, {pipeline_mode = #tpu.pipeline_mode<synchronous>, transform_indices = @transform_7, window_bounds = array<i64: 1, 32>}, {pipeline_mode = #tpu.pipeline_mode<synchronous>, transform_indices = @transform_8, window_bounds = array<i64: 32, 128>}, {pipeline_mode = #tpu.pipeline_mode<synchronous>, transform_indices = @transform_9, window_bounds = array<i64: 64, 32>}, {transform_indices = @transform_10, window_bounds = array<i64: 1, 8, 32>}]} {
    %c0 = arith.constant 0 : index
    %c0_0 = arith.constant 0 : index
    %c0_1 = arith.constant 0 : index
    %0 = vector.load %arg1[%c0, %c0_0, %c0_1] : memref<1x8x32xf32, #tpu.memory_space<vmem>>, vector<1x8x32xf32>
    %1 = vector.shape_cast %0 : vector<1x8x32xf32> to vector<8x32xf32>
    %c0_2 = arith.constant 0 : index
    %c0_3 = arith.constant 0 : index
    %2 = vector.load %arg4[%c0_2, %c0_3] : memref<1x32xf32, #tpu.memory_space<vmem>>, vector<1x32xf32>
    %3 = arith.mulf %1, %1 : vector<8x32xf32>
    %cst = arith.constant dense<0.000000e+00> : vector<8xf32>
    %4 = vector.multi_reduction <add>, %3, %cst [1] : vector<8x32xf32> to vector<8xf32>
    %5 = vector.shape_cast %4 : vector<8xf32> to vector<8x1xf32>
    %cst_4 = arith.constant 3.200000e+01 : f32
    %6 = vector.broadcast %cst_4 : f32 to vector<8x1xf32>
    %7 = arith.divf %5, %6 : vector<8x1xf32>
    %cst_5 = arith.constant 9.99999997E-7 : f32
    %8 = vector.broadcast %cst_5 : f32 to vector<8x1xf32>
    %9 = arith.addf %7, %8 : vector<8x1xf32>
    %10 = math.rsqrt %9 : vector<8x1xf32>
    %11 = vector.broadcast %10 : vector<8x1xf32> to vector<8x32xf32>
    %12 = arith.mulf %1, %11 : vector<8x32xf32>
    %13 = vector.broadcast %2 : vector<1x32xf32> to vector<8x32xf32>
    %14 = arith.mulf %12, %13 : vector<8x32xf32>
    %15 = arith.truncf %14 : vector<8x32xf32> to vector<8x32xbf16>
    %c0_6 = arith.constant 0 : index
    %c0_7 = arith.constant 0 : index
    %16 = vector.load %arg5[%c0_6, %c0_7] : memref<32x64xbf16, #tpu.memory_space<vmem>>, vector<32x64xbf16>
    %cst_8 = arith.constant dense<0.000000e+00> : vector<8x64xf32>
    %17 = tpu.matmul %15, %16, %cst_8 {dimension_numbers = #tpu.dot_dimension_numbers<[1], [0], [0], [1], [0, 0, 1, 1], [], []>} : vector<8x32xbf16>, vector<32x64xbf16>, vector<8x64xf32> -> vector<8x64xf32>
    %c0_9 = arith.constant 0 : index
    %c0_10 = arith.constant 0 : index
    %18 = vector.load %arg6[%c0_9, %c0_10] : memref<1x64xf32, #tpu.memory_space<vmem>>, vector<1x64xf32>
    %19 = vector.broadcast %18 : vector<1x64xf32> to vector<8x64xf32>
    %20 = arith.addf %17, %19 : vector<8x64xf32>
    %21 = vector.extract_strided_slice %20 {offsets = [0, 0], sizes = [8, 32], strides = [1, 1]} : vector<8x64xf32> to vector<8x32xf32>
    %22 = vector.shape_cast %21 : vector<8x32xf32> to vector<8x4x8xf32>
    %23 = tpu.transpose %22, [1, 0, 2] : vector<8x4x8xf32> -> vector<4x8x8xf32>
    %24 = vector.extract_strided_slice %20 {offsets = [0, 32], sizes = [8, 16], strides = [1, 1]} : vector<8x64xf32> to vector<8x16xf32>
    %25 = vector.shape_cast %24 : vector<8x16xf32> to vector<8x2x8xf32>
    %26 = tpu.transpose %25, [1, 0, 2] : vector<8x2x8xf32> -> vector<2x8x8xf32>
    %27 = vector.extract_strided_slice %20 {offsets = [0, 48], sizes = [8, 16], strides = [1, 1]} : vector<8x64xf32> to vector<8x16xf32>
    %28 = vector.shape_cast %27 : vector<8x16xf32> to vector<8x2x8xf32>
    %29 = tpu.transpose %28, [1, 0, 2] : vector<8x2x8xf32> -> vector<2x8x8xf32>
    %c0_11 = arith.constant 0 : index
    %c0_12 = arith.constant 0 : index
    %30 = vector.load %arg2[%c0_11, %c0_12] : memref<8x8xf32, #tpu.memory_space<vmem>>, vector<8x8xf32>
    %c0_13 = arith.constant 0 : index
    %c0_14 = arith.constant 0 : index
    %31 = vector.load %arg3[%c0_13, %c0_14] : memref<8x8xf32, #tpu.memory_space<vmem>>, vector<8x8xf32>
    %32 = vector.shape_cast %30 : vector<8x8xf32> to vector<1x8x8xf32>
    %33 = vector.broadcast %32 : vector<1x8x8xf32> to vector<4x8x8xf32>
    %34 = arith.mulf %23, %33 : vector<4x8x8xf32>
    %c4_i32 = arith.constant 4 : i32
    %35 = tpu.dynamic_rotate %23 by %c4_i32 dim 2 : vector<4x8x8xf32>, i32 -> vector<4x8x8xf32>
    %36 = vector.shape_cast %31 : vector<8x8xf32> to vector<1x8x8xf32>
    %37 = vector.broadcast %36 : vector<1x8x8xf32> to vector<4x8x8xf32>
    %38 = arith.mulf %35, %37 : vector<4x8x8xf32>
    %39 = arith.addf %34, %38 : vector<4x8x8xf32>
    %40 = vector.shape_cast %30 : vector<8x8xf32> to vector<1x8x8xf32>
    %41 = vector.broadcast %40 : vector<1x8x8xf32> to vector<2x8x8xf32>
    %42 = arith.mulf %26, %41 : vector<2x8x8xf32>
    %c4_i32_15 = arith.constant 4 : i32
    %43 = tpu.dynamic_rotate %26 by %c4_i32_15 dim 2 : vector<2x8x8xf32>, i32 -> vector<2x8x8xf32>
    %44 = vector.shape_cast %31 : vector<8x8xf32> to vector<1x8x8xf32>
    %45 = vector.broadcast %44 : vector<1x8x8xf32> to vector<2x8x8xf32>
    %46 = arith.mulf %43, %45 : vector<2x8x8xf32>
    %47 = arith.addf %42, %46 : vector<2x8x8xf32>
    %48 = vector.shape_cast %47 : vector<2x8x8xf32> to vector<2x1x8x8xf32>
    %49 = vector.shape_cast %48 : vector<2x1x8x8xf32> to vector<2x1x8x8xf32>
    %50 = vector.broadcast %49 : vector<2x1x8x8xf32> to vector<2x2x8x8xf32>
    %51 = vector.shape_cast %50 : vector<2x2x8x8xf32> to vector<4x8x8xf32>
    %52 = vector.shape_cast %29 : vector<2x8x8xf32> to vector<2x1x8x8xf32>
    %53 = vector.shape_cast %52 : vector<2x1x8x8xf32> to vector<2x1x8x8xf32>
    %54 = vector.broadcast %53 : vector<2x1x8x8xf32> to vector<2x2x8x8xf32>
    %55 = vector.shape_cast %54 : vector<2x2x8x8xf32> to vector<4x8x8xf32>
    %56 = arith.truncf %39 : vector<4x8x8xf32> to vector<4x8x8xbf16>
    %57 = arith.truncf %51 : vector<4x8x8xf32> to vector<4x8x8xbf16>
    "tpu.trace_start"() <{level = 10 : i32, message = "htd,hsd->hts"}> : () -> ()
    %cst_16 = arith.constant dense<0.000000e+00> : vector<4x8x8xf32>
    %58 = tpu.matmul %56, %57, %cst_16 {dimension_numbers = #tpu.dot_dimension_numbers<[2], [2], [1], [1], [0, 0, 0, 1, 1, 1], [0], [0]>} : vector<4x8x8xbf16>, vector<4x8x8xbf16>, vector<4x8x8xf32> -> vector<4x8x8xf32>
    "tpu.trace_stop"() : () -> ()
    %59 = tpu.iota {dimensions = array<i32: 0>} : vector<8x8xi32>
    %60 = tpu.iota {dimensions = array<i32: 1>} : vector<8x8xi32>
    %61 = arith.cmpi sle, %60, %59 : vector<8x8xi32>
    %cst_17 = arith.constant -1.000000e+30 : f32
    %62 = vector.shape_cast %61 : vector<8x8xi1> to vector<1x8x8xi1>
    %63 = vector.broadcast %62 : vector<1x8x8xi1> to vector<4x8x8xi1>
    %64 = vector.broadcast %cst_17 : f32 to vector<4x8x8xf32>
    %65 = arith.select %63, %58, %64 : vector<4x8x8xi1>, vector<4x8x8xf32>
    %cst_18 = arith.constant dense<0xFF800000> : vector<4x8xf32>
    %66 = vector.multi_reduction <maximumf>, %65, %cst_18 [2] : vector<4x8x8xf32> to vector<4x8xf32>
    %67 = vector.shape_cast %66 : vector<4x8xf32> to vector<4x8x1xf32>
    %68 = vector.broadcast %67 : vector<4x8x1xf32> to vector<4x8x8xf32>
    %69 = arith.subf %65, %68 : vector<4x8x8xf32>
    %70 = math.exp %69 : vector<4x8x8xf32>
    %cst_19 = arith.constant dense<0.000000e+00> : vector<4x8xf32>
    %71 = vector.multi_reduction <add>, %70, %cst_19 [2] : vector<4x8x8xf32> to vector<4x8xf32>
    %72 = vector.shape_cast %71 : vector<4x8xf32> to vector<4x8x1xf32>
    %73 = arith.truncf %70 : vector<4x8x8xf32> to vector<4x8x8xbf16>
    %74 = arith.truncf %55 : vector<4x8x8xf32> to vector<4x8x8xbf16>
    "tpu.trace_start"() <{level = 10 : i32, message = "hts,hsd->htd"}> : () -> ()
    %cst_20 = arith.constant dense<0.000000e+00> : vector<4x8x8xf32>
    %75 = tpu.matmul %73, %74, %cst_20 {dimension_numbers = #tpu.dot_dimension_numbers<[2], [1], [1], [2], [0, 0, 0, 1, 1, 2], [0], [0]>} : vector<4x8x8xbf16>, vector<4x8x8xbf16>, vector<4x8x8xf32> -> vector<4x8x8xf32>
    "tpu.trace_stop"() : () -> ()
    %76 = tpu.reciprocal %72 {approx = true} : vector<4x8x1xf32> -> vector<4x8x1xf32>
    %77 = vector.broadcast %76 : vector<4x8x1xf32> to vector<4x8x8xf32>
    %78 = arith.mulf %75, %77 : vector<4x8x8xf32>
    %79 = tpu.transpose %78, [1, 0, 2] : vector<4x8x8xf32> -> vector<8x4x8xf32>
    %80 = vector.shape_cast %79 : vector<8x4x8xf32> to vector<8x32xf32>
    %81 = arith.truncf %80 : vector<8x32xf32> to vector<8x32xbf16>
    %c0_21 = arith.constant 0 : index
    %c0_22 = arith.constant 0 : index
    %82 = vector.load %arg7[%c0_21, %c0_22] : memref<32x32xbf16, #tpu.memory_space<vmem>>, vector<32x32xbf16>
    %cst_23 = arith.constant dense<0.000000e+00> : vector<8x32xf32>
    %83 = tpu.matmul %81, %82, %cst_23 {dimension_numbers = #tpu.dot_dimension_numbers<[1], [0], [0], [1], [0, 0, 1, 1], [], []>} : vector<8x32xbf16>, vector<32x32xbf16>, vector<8x32xf32> -> vector<8x32xf32>
    %84 = arith.addf %1, %83 : vector<8x32xf32>
    %c0_24 = arith.constant 0 : index
    %c0_25 = arith.constant 0 : index
    %85 = vector.load %arg8[%c0_24, %c0_25] : memref<1x32xf32, #tpu.memory_space<vmem>>, vector<1x32xf32>
    %86 = arith.mulf %84, %84 : vector<8x32xf32>
    %cst_26 = arith.constant dense<0.000000e+00> : vector<8xf32>
    %87 = vector.multi_reduction <add>, %86, %cst_26 [1] : vector<8x32xf32> to vector<8xf32>
    %88 = vector.shape_cast %87 : vector<8xf32> to vector<8x1xf32>
    %cst_27 = arith.constant 3.200000e+01 : f32
    %89 = vector.broadcast %cst_27 : f32 to vector<8x1xf32>
    %90 = arith.divf %88, %89 : vector<8x1xf32>
    %cst_28 = arith.constant 9.99999997E-7 : f32
    %91 = vector.broadcast %cst_28 : f32 to vector<8x1xf32>
    %92 = arith.addf %90, %91 : vector<8x1xf32>
    %93 = math.rsqrt %92 : vector<8x1xf32>
    %94 = vector.broadcast %93 : vector<8x1xf32> to vector<8x32xf32>
    %95 = arith.mulf %84, %94 : vector<8x32xf32>
    %96 = vector.broadcast %85 : vector<1x32xf32> to vector<8x32xf32>
    %97 = arith.mulf %95, %96 : vector<8x32xf32>
    %98 = arith.truncf %97 : vector<8x32xf32> to vector<8x32xbf16>
    %c0_29 = arith.constant 0 : index
    %c0_30 = arith.constant 0 : index
    %99 = vector.load %arg9[%c0_29, %c0_30] : memref<32x128xbf16, #tpu.memory_space<vmem>>, vector<32x128xbf16>
    %cst_31 = arith.constant dense<0.000000e+00> : vector<8x128xf32>
    %100 = tpu.matmul %98, %99, %cst_31 {dimension_numbers = #tpu.dot_dimension_numbers<[1], [0], [0], [1], [0, 0, 1, 1], [], []>} : vector<8x32xbf16>, vector<32x128xbf16>, vector<8x128xf32> -> vector<8x128xf32>
    %101 = vector.extract_strided_slice %100 {offsets = [0, 0], sizes = [8, 64], strides = [1, 1]} : vector<8x128xf32> to vector<8x64xf32>
    %102 = vector.extract_strided_slice %100 {offsets = [0, 64], sizes = [8, 64], strides = [1, 1]} : vector<8x128xf32> to vector<8x64xf32>
    %103 = arith.negf %101 : vector<8x64xf32>
    %104 = math.exp %103 : vector<8x64xf32>
    %cst_32 = arith.constant 1.000000e+00 : f32
    %105 = vector.broadcast %cst_32 : f32 to vector<8x64xf32>
    %106 = arith.addf %105, %104 : vector<8x64xf32>
    %107 = arith.divf %105, %106 : vector<8x64xf32>
    %108 = arith.mulf %101, %107 : vector<8x64xf32>
    %109 = arith.mulf %108, %102 : vector<8x64xf32>
    %110 = arith.truncf %109 : vector<8x64xf32> to vector<8x64xbf16>
    %c0_33 = arith.constant 0 : index
    %c0_34 = arith.constant 0 : index
    %111 = vector.load %arg10[%c0_33, %c0_34] : memref<64x32xbf16, #tpu.memory_space<vmem>>, vector<64x32xbf16>
    %cst_35 = arith.constant dense<0.000000e+00> : vector<8x32xf32>
    %112 = tpu.matmul %110, %111, %cst_35 {dimension_numbers = #tpu.dot_dimension_numbers<[1], [0], [0], [1], [0, 0, 1, 1], [], []>} : vector<8x64xbf16>, vector<64x32xbf16>, vector<8x32xf32> -> vector<8x32xf32>
    %113 = arith.addf %84, %112 : vector<8x32xf32>
    %c0_36 = arith.constant 0 : index
    %c0_37 = arith.constant 0 : index
    %c0_38 = arith.constant 0 : index
    %114 = vector.load %arg11[%c0_36, %c0_37, %c0_38] : memref<1x8x32xf32, #tpu.memory_space<vmem>>, vector<1x8x32xf32>
    %115 = vector.shape_cast %114 : vector<1x8x32xf32> to vector<8x32xf32>
    %116 = vector.shape_cast %113 : vector<8x32xf32> to vector<1x8x32xf32>
    tpu.vector_store %arg11[%c0_36, %c0_37, %c0_38], %116 {strides = array<i32>} : memref<1x8x32xf32, #tpu.memory_space<vmem>>, vector<1x8x32xf32>,
    return
  }
  func.func @transform_0(%arg0: i32) -> (i32, i32, i32) {
    %c0_i32 = arith.constant 0 : i32
    %c0_i32_0 = arith.constant 0 : i32
    %c0_i32_1 = arith.constant 0 : i32
    return %arg0, %c0_i32, %c0_i32_0 : i32, i32, i32
  }
  func.func @transform_1(%arg0: i32) -> (i32, i32) {
    %c0_i32 = arith.constant 0 : i32
    %c0_i32_0 = arith.constant 0 : i32
    %c0_i32_1 = arith.constant 0 : i32
    return %c0_i32, %c0_i32_0 : i32, i32
  }
  func.func @transform_2(%arg0: i32) -> (i32, i32) {
    %c0_i32 = arith.constant 0 : i32
    %c0_i32_0 = arith.constant 0 : i32
    %c0_i32_1 = arith.constant 0 : i32
    return %c0_i32, %c0_i32_0 : i32, i32
  }
  func.func @transform_3(%arg0: i32) -> (i32, i32) {
    %c0_i32 = arith.constant 0 : i32
    %c0_i32_0 = arith.constant 0 : i32
    %c0_i32_1 = arith.constant 0 : i32
    return %c0_i32, %c0_i32_0 : i32, i32
  }
  func.func @transform_4(%arg0: i32) -> (i32, i32) {
    %c0_i32 = arith.constant 0 : i32
    %c0_i32_0 = arith.constant 0 : i32
    %c0_i32_1 = arith.constant 0 : i32
    return %c0_i32, %c0_i32_0 : i32, i32
  }
  func.func @transform_5(%arg0: i32) -> (i32, i32) {
    %c0_i32 = arith.constant 0 : i32
    %c0_i32_0 = arith.constant 0 : i32
    %c0_i32_1 = arith.constant 0 : i32
    return %c0_i32, %c0_i32_0 : i32, i32
  }
  func.func @transform_6(%arg0: i32) -> (i32, i32) {
    %c0_i32 = arith.constant 0 : i32
    %c0_i32_0 = arith.constant 0 : i32
    %c0_i32_1 = arith.constant 0 : i32
    return %c0_i32, %c0_i32_0 : i32, i32
  }
  func.func @transform_7(%arg0: i32) -> (i32, i32) {
    %c0_i32 = arith.constant 0 : i32
    %c0_i32_0 = arith.constant 0 : i32
    %c0_i32_1 = arith.constant 0 : i32
    return %c0_i32, %c0_i32_0 : i32, i32
  }
  func.func @transform_8(%arg0: i32) -> (i32, i32) {
    %c0_i32 = arith.constant 0 : i32
    %c0_i32_0 = arith.constant 0 : i32
    %c0_i32_1 = arith.constant 0 : i32
    return %c0_i32, %c0_i32_0 : i32, i32
  }
  func.func @transform_9(%arg0: i32) -> (i32, i32) {
    %c0_i32 = arith.constant 0 : i32
    %c0_i32_0 = arith.constant 0 : i32
    %c0_i32_1 = arith.constant 0 : i32
    return %c0_i32, %c0_i32_0 : i32, i32
  }
  func.func @transform_10(%arg0: i32) -> (i32, i32, i32) {
    %c0_i32 = arith.constant 0 : i32
    %c0_i32_0 = arith.constant 0 : i32
    %c0_i32_1 = arith.constant 0 : i32
    return %arg0, %c0_i32, %c0_i32_0 : i32, i32, i32
  }
}

</mosaic_0001>

<llo_original>
// kernel: _lambda_.5
$region0: #{_lambda_.5}
  #allocation0 [shape = 'u32[]', space=smem, size = 0x4, offset = 0x4, fixed_abs, tag = 'smem constant byte address 0x4 - core index']
  #allocation1 [shape = 'u32[144,128]{1,0:T(1,128)}', space=vmem, size = 0x12000, scoped, tag = 'internal scratch']
  %s0 = inlined_call_operand.vmem [shape: f32[2,8,32], index: 0, kind: input, shape index: {}]
  %s1 = inlined_call_operand.vmem [shape: f32[1,32], index: 1, kind: input, shape index: {}]
  %s2 = inlined_call_operand.vmem [shape: bf16[32,64], index: 2, kind: input, shape index: {}]
  %s3 = inlined_call_operand.hbm [shape: f32[2,8,64], index: 3, kind: output, shape index: {}]
  %s4 = sld [smem:[#allocation0]]
  $region45: #{_lambda_.5} parent=0
    _
  %s6 = ssub.s32 1, %s4
  %s7 = scalar_select 0, %s6, %s4
  $region1: #{_lambda_.5} parent=0
    #allocation2 [shape = 'u8[8192]{0}', space=vmem, size = 0x2000, scoped, tag = 'output window, operand 0']
    #allocation3 [shape = 's32[2]{0}', space=sflag, size = 0x8, scoped, tag = 'scoped memory for _lambda_.5']
    %8 = vsyncpa [#allocation3], 0
    %s9 = scalar_lea.sflag [#allocation3], 1
    %10 = vsyncpa %s9, 0
    loop: start=0, step=1, limit=4
    $region2: #{_lambda_.5} parent=1 // loop_pre_header
      _
    $region3: #{_lambda_.5} parent=1 // loop_header
      %s12 = sphi 0, %s16
      %p13 = scmp.ge.s32.totalorder %s12, 4
      %s19 = sphi 0, %s31
      %s20 = sphi 0, %s27
      %s21 = sphi 0, %s19
      %s22 = sphi 0, %s20
      %s23 = sphi 0, %s21
      %s24 = sphi 0, %s22
      %s34 = sphi 0, %s36
      %s37 = sphi 0, %s34
      %s38 = sphi 0, %s37
      %s54 = sphi 0, %s38
      %s58 = sphi 0, %s58
      %s60 = sphi 0, %s58
      %s61 = sphi 0, %s60
      %s75 = sphi 0, %s61
      %s81 = sphi 0, %s83
      %s84 = sphi 0, %s81
      %s85 = sphi 0, %s84
      %s101 = sphi 0, %s85
      %s109 = sphi 0, %s111
      %s112 = sphi 0, %s109
      %s113 = sphi 0, %s112
      %s129 = sphi 0, %s113
    $region4: #{_lambda_.5} parent=1 // loop_header_branch
      %15 = sbr.rel (%p13) target = $region8
    $region5: #{_lambda_.5} parent=1 // loop_body
      %s17 = ssub.s32 %s12, 1
      %s18 = ssub.s32 %s12, 2
      %s25 = sadd.s32 1, %s20
      %p26 = scmp.ge.s32.totalorder %s25, 1
      %s27 = scalar_select %p26, 0, %s25
      %s28 = sadd.s32 1, %s19
      %s29 = scalar_select %p26, %s28, %s19
      %p30 = scmp.ge.s32.totalorder %s29, 2
      %s31 = scalar_select %p30, 0, %s29
      %s32 = ssub.s32 %s19, %s31
      %p33 = scmp.eq.s32.totalorder %s32, 0
      %s35 = sadd.s32 %s34, 1
      %s36 = scalar_select %p33, %s34, %s35
      %p39 = pneg %p33
      %p40 = scmp.eq.s32.totalorder %s12, 1
      %p41 = por %p39, %p40
      %p42 = scmp.ne.s32.totalorder %s34, %s37
      %p43 = scmp.eq.s32.totalorder %s12, 0
      %p44 = por %p42, %p43
      %p45 = scmp.ne.s32.totalorder %s34, %s37
      %p46 = scmp.eq.s32.totalorder %s17, 1
      %p47 = por %p45, %p46
      %p48 = scmp.ne.s32.totalorder %s37, %s38
      %p49 = scmp.eq.s32.totalorder %s17, 0
      %p50 = por %p48, %p49
      %p51 = scmp.ne.s32.totalorder %s37, %s38
      %p52 = scmp.eq.s32.totalorder %s18, 1
      %p53 = por %p51, %p52
      %p55 = scmp.ne.s32.totalorder %s38, %s54
      %p56 = scmp.eq.s32.totalorder %s18, 0
      %p57 = por %p55, %p56
      %s59 = sadd.s32 %s58, 1
      %p62 = scmp.eq.s32.totalorder %s12, 1
      %p63 = scmp.ne.s32.totalorder %s58, %s60
      %p64 = scmp.eq.s32.totalorder %s12, 0
      %p65 = por %p63, %p64
      %p66 = scmp.ne.s32.totalorder %s58, %s60
      %p67 = scmp.eq.s32.totalorder %s17, 1
      %p68 = por %p66, %p67
      %p69 = scmp.ne.s32.totalorder %s60, %s61
      %p70 = scmp.eq.s32.totalorder %s17, 0
      %p71 = por %p69, %p70
      %p72 = scmp.ne.s32.totalorder %s60, %s61
      %p73 = scmp.eq.s32.totalorder %s18, 1
      %p74 = por %p72, %p73
      %p76 = scmp.ne.s32.totalorder %s61, %s75
      %p77 = scmp.eq.s32.totalorder %s18, 0
      %p78 = por %p76, %p77
      %s79 = ssub.s32 %s20, %s27
      %p80 = scmp.eq.s32.totalorder %s79, 0
      %s82 = sadd.s32 %s81, 1
      %s83 = scalar_select %p80, %s81, %s82
      %p86 = pneg %p80
      %p87 = scmp.eq.s32.totalorder %s12, 1
      %p88 = por %p86, %p87
      %p89 = scmp.ne.s32.totalorder %s81, %s84
      %p90 = scmp.eq.s32.totalorder %s12, 0
      %p91 = por %p89, %p90
      %p92 = scmp.ne.s32.totalorder %s81, %s84
      %p93 = scmp.eq.s32.totalorder %s17, 1
      %p94 = por %p92, %p93
      %p95 = scmp.ne.s32.totalorder %s84, %s85
      %p96 = scmp.eq.s32.totalorder %s17, 0
      %p97 = por %p95, %p96
      %p98 = scmp.ne.s32.totalorder %s84, %s85
      %p99 = scmp.eq.s32.totalorder %s18, 1
      %p100 = por %p98, %p99
      %p102 = scmp.ne.s32.totalorder %s85, %s101
      %p103 = scmp.eq.s32.totalorder %s18, 0
      %p104 = por %p102, %p103
      %s105 = ssub.s32 %s19, %s31
      %s106 = ssub.s32 %s20, %s27
      %s107 = sor.u32 %s105, %s106
      %p108 = scmp.eq.s32.totalorder %s107, 0
      %s110 = sadd.s32 %s109, 1
      %s111 = scalar_select %p108, %s109, %s110
      %p114 = pneg %p108
      %p115 = scmp.eq.s32.totalorder %s12, 1
      %p116 = por %p114, %p115
      %p117 = scmp.ne.s32.totalorder %s109, %s112
      %p118 = scmp.eq.s32.totalorder %s12, 0
      %p119 = por %p117, %p118
      %p120 = scmp.ne.s32.totalorder %s109, %s112
      %p121 = scmp.eq.s32.totalorder %s17, 1
      %p122 = por %p120, %p121
      %p123 = scmp.ne.s32.totalorder %s112, %s113
      %p124 = scmp.eq.s32.totalorder %s17, 0
      %p125 = por %p123, %p124
      %p126 = scmp.ne.s32.totalorder %s112, %s113
      %p127 = scmp.eq.s32.totalorder %s18, 1
      %p128 = por %p126, %p127
      %p130 = scmp.ne.s32.totalorder %s113, %s129
      %p131 = scmp.eq.s32.totalorder %s18, 0
      %p132 = por %p130, %p131
      %p133 = scmp.le.s32.totalorder 1, %s12
      %p134 = scmp.lt.s32.totalorder %s12, 3
      %p135 = pnand %p133, %p134
      %p136 = pneg %p135
      // Predicated region
      $region9: #{_lambda_.5} parent=5 // pred_check
        _
      $region10: #{_lambda_.5} parent=5 // pred_check_branch
        %138 = sbr.rel (%p135) target = $region12
      $region11: #{_lambda_.5} parent=5 // pred_region
        %s139 = ssub.s32 %s12, 1
        // Predicated region
        $region13: #{_lambda_.5} parent=11 // pred_check
          %p140 = pneg %p71
        $region14: #{_lambda_.5} parent=11 // pred_check_branch
          %142 = sbr.rel (%p140) target = $region16
        $region15: #{_lambda_.5} parent=11 // pred_region
          _
        $region16: #{_lambda_.5} parent=11 // pred_fallthru
          _
        // Predicated region
        $region17: #{_lambda_.5} parent=11 // pred_check
          %p143 = pneg %p97
        $region18: #{_lambda_.5} parent=11 // pred_check_branch
          %145 = sbr.rel (%p143) target = $region20
        $region19: #{_lambda_.5} parent=11 // pred_region
          %p146 = scmp.lt.s32.totalorder %s22, 0
          %s147 = scalar_select %p146, %s22, 0
          %s148 = smul.addr %s147, 4
          %s149 = scalar_lea.vmem %s2, %s148
        $region20: #{_lambda_.5} parent=11 // pred_fallthru
          _
      $region12: #{_lambda_.5} parent=5 // pred_fallthru
        _
      %p150 = scmp.lt.s32.totalorder %s12, 2
      // Predicated region
      $region21: #{_lambda_.5} parent=5 // pred_check
        %p151 = pneg %p150
      $region22: #{_lambda_.5} parent=5 // pred_check_branch
        %153 = sbr.rel (%p151) target = $region24
      $region23: #{_lambda_.5} parent=5 // pred_region
        // Predicated region
        $region25: #{_lambda_.5} parent=23 // pred_check
          %p154 = pneg %p44
        $region26: #{_lambda_.5} parent=23 // pred_check_branch
          %156 = sbr.rel (%p154) target = $region28
        $region27: #{_lambda_.5} parent=23 // pred_region
          %p157 = scmp.lt.s32.totalorder %s19, 1
          %s158 = scalar_select %p157, %s19, 1
          %s159 = smul.addr %s158, 8
          %s160 = scalar_lea.vmem %s0, %s159
        $region28: #{_lambda_.5} parent=23 // pred_fallthru
          _
      $region24: #{_lambda_.5} parent=5 // pred_fallthru
        _
      %p161 = scmp.le.s32.totalorder 1, %s12
      %p162 = scmp.lt.s32.totalorder %s12, 3
      %p163 = pnand %p161, %p162
      %p164 = pneg %p163
      // Predicated region
      $region29: #{_lambda_.5} parent=5 // pred_check
        _
      $region30: #{_lambda_.5} parent=5 // pred_check_branch
        %166 = sbr.rel (%p163) target = $region32
      $region31: #{_lambda_.5} parent=5 // pred_region
        %s167 = ssub.s32 %s12, 1
        %p168 = scmp.lt.s32.totalorder %s21, 1
        %s169 = scalar_select %p168, %s21, 1
        %s170 = smul.addr %s169, 8
        %s171 = scalar_lea.vmem %s0, %s170
        %p172 = pneg %p50
        %p173 = pneg %p47
        %p174 = pneg %p71
        %p175 = pneg %p68
        %p176 = scmp.lt.s32.totalorder %s22, 0
        %s177 = scalar_select %p176, %s22, 0
        %s178 = smul.addr %s177, 4
        %s179 = scalar_lea.vmem %s2, %s178
        %p180 = pneg %p97
        %p181 = pneg %p94
        %p182 = pneg %p125
        %p183 = pneg %p122
        %s184 = sand.u32 %s112, 1
        %s185 = scalar_lea.sflag [#allocation3], %s184
        %s186 = sand.u32 %s112, 1
        %s187 = smul.addr %s186, 8
        %s188 = scalar_lea.vmem [#allocation2], %s187
        %p189 = scmp.lt.s32.totalorder %s21, 1
        %s190 = scalar_select %p189, %s21, 1
        %s191 = smul.addr %s190, 8
        %s192 = scalar_lea.vmem %s0, %s191
        %p193 = scmp.lt.s32.totalorder %s22, 0
        %s194 = scalar_select %p193, %s22, 0
        %s195 = smul.addr %s194, 4
        %s196 = scalar_lea.vmem %s2, %s195
        %v198 = vld [vmem:[%s192] sm:$0xff]
        %v199 = vmul.f32 %v198, %v198
        %vm200 = vcmask 261120
        %v201 = vsel %vm200, %v199, 0.0
        %202 = vadd.xlane.f32.xlu0 %v201
        %v203 = vpop.xlane.xlu0 %202
        %v204 = vrcp.pop 32.0
        %v205 = vmul.f32 %v203, %v204
        %v206 = vadd.f32 %v205, 1e-06
        %v207 = vrsqrt.pop %v206
        %v208 = vmul.f32 %v198, %v207
        %v209 = vld [vmem:[%s1] sm:$0x1]
        %v211 = vlaneseq
        %v212 = vshrl.u32 %v211, 7
        %v213 = vsub.s32 0, %v212
        %v214 = vrot.slane %v209, %v213
        %v216 = vmul.f32 %v208, %v214
        %v217 = vpack.c.bf16 %v216, %v216
        %v218 = vld [vmem:[%s196] sm:$0xf]
        %v219 = vld [vmem:[%s196 + $0x4] sm:$0xf]
        %v220 = vld [vmem:[%s196 + $0x8] sm:$0xf]
        %v221 = vld [vmem:[%s196 + $0xc] sm:$0xf]
        %v226 = vunpack.c.l.b16 %v218
        %v227 = vunpack.c.l.b16 %v219
        %v228 = vunpack.c.l.b16 %v220
        %v229 = vunpack.c.l.b16 %v221
        %v230 = vpack.c.b16 %v227, %v226
        %v231 = vpack.c.b16 %v229, %v228
        %v235 = vsel %vm200, %v217, 0
        %237 = vmatprep.subr.bf16.mxu0 0
        %238 = vmatpush1.bf16.msra.mxu0 0
        %239 = vmatprep.subr.bf16.mxu0 0
        %240 = vmatpush1.bf16.msra.mxu0 0
        %241 = vmatprep.subr.bf16.mxu0 0
        %242 = vmatpush1.bf16.msra.mxu0 0
        %243 = vmatprep.subr.bf16.mxu0 0
        %244 = vmatpush1.bf16.msra.mxu0 0
        %245 = vmatprep.subr.bf16.mxu0 0
        %246 = vmatpush1.bf16.msra.mxu0 0
        %247 = vmatprep.subr.bf16.mxu0 0
        %248 = vmatpush1.bf16.msra.mxu0 0
        %249 = vmatprep.subr.bf16.mxu0 0
        %250 = vmatpush1.bf16.msra.mxu0 %v231
        %251 = vmatprep.subr.bf16.mxu0 0
        %252 = vmatpush1.bf16.msra.mxu0 %v230
        %253 = vmatprep.subr.bf16.mxu0 0
        %254 = vmatpush2.bf16.msra.mxu0 0
        %255 = vmatprep.subr.bf16.mxu0 0
        %256 = vmatpush2.bf16.msra.mxu0 0
        %257 = vmatprep.subr.bf16.mxu0 0
        %258 = vmatpush2.bf16.msra.mxu0 0
        %259 = vmatprep.subr.bf16.mxu0 0
        %260 = vmatpush2.bf16.msra.mxu0 0
        %261 = vmatprep.subr.bf16.mxu0 0
        %262 = vmatpush2.bf16.msra.mxu0 0
        %263 = vmatprep.subr.bf16.mxu0 0
        %264 = vmatpush2.bf16.msra.mxu0 0
        %265 = vmatprep.subr.bf16.mxu0 0
        %266 = vmatpush2.bf16.msra.mxu0 0
        %267 = vmatprep.subr.bf16.mxu0 0
        %268 = vmatpush2.bf16.msra.mxu0 0
        %269 = vmatprep.mubr.bf16.mxu0 0
        %270 = vmatmul.mubr.bf16.gmra.mxu0 %v235
        %v271 = vpop.f32.mrf.mxu0
        %v272 = vadd.f32 0.0, %v271
        %v273 = vpop.f32.mrf.mxu0
        %v274 = vpop.f32.mrf.mxu0
        %v275 = vpop.f32.mrf.mxu0
        %276 = vdwg.mxu0
        %vm277 = vcmask 523264
        %278 = vst.msk [vmem:[%s188] sm:$0xff] %vm277, %v272
        %s279 = sand.u32 %s112, 1
        %s280 = scalar_lea.sflag [#allocation3], %s279
        %s281 = sand.u32 %s112, 1
        %s282 = smul.addr %s281, 8
        %s283 = scalar_lea.vmem [#allocation2], %s282
        // Predicated region
        $region33: #{_lambda_.5} parent=31 // pred_check
          %p284 = pneg %p122
        $region34: #{_lambda_.5} parent=31 // pred_check_branch
          %286 = sbr.rel (%p284) target = $region36
        $region35: #{_lambda_.5} parent=31 // pred_region
          %s288 = ssub.s32 128, 128
          %289 = vsyncadd %s280, %s288
          %s290 = sadd.s32 %s22, %s21
          %s291 = smul.addr %s290, 128
          %s292 = scalar_lea.hbm %s3, %s291
          %s294 = sshll.u32 %s283, 4
          %s295 = int_to_ptr.vmem [resolvable:$true] %s294
          %297 = dma.vmem_to_hbm [thread:$0]  %s295, 128, %s292, %s280
        $region36: #{_lambda_.5} parent=31 // pred_fallthru
          _
      $region32: #{_lambda_.5} parent=5 // pred_fallthru
        _
      %p298 = scmp.le.s32.totalorder 2, %s12
      // Predicated region
      $region37: #{_lambda_.5} parent=5 // pred_check
        %p299 = pneg %p298
      $region38: #{_lambda_.5} parent=5 // pred_check_branch
        %301 = sbr.rel (%p299) target = $region40
      $region39: #{_lambda_.5} parent=5 // pred_region
        %s302 = ssub.s32 %s12, 2
        // Predicated region
        $region41: #{_lambda_.5} parent=39 // pred_check
          %p303 = pneg %p128
        $region42: #{_lambda_.5} parent=39 // pred_check_branch
          %305 = sbr.rel (%p303) target = $region44
        $region43: #{_lambda_.5} parent=39 // pred_region
          %s306 = sand.u32 %s113, 1
          %s307 = scalar_lea.sflag [#allocation3], %s306
          %s308 = sand.u32 %s113, 1
          %s309 = smul.addr %s308, 8
          %s310 = scalar_lea.vmem [#allocation2], %s309
          %311 = dma.done %s307, 128
        $region44: #{_lambda_.5} parent=39 // pred_fallthru
          _
      $region40: #{_lambda_.5} parent=5 // pred_fallthru
        _
    $region6: #{_lambda_.5} parent=1 // loop_footer
      %s16 = sadd.s32 1, %s12
    $region7: #{_lambda_.5} parent=1 // loop_footer_branch
      %11 = sbr.rel target = $region3
    $region8: #{_lambda_.5} parent=1 // loop_exit
      _
    %312 = vsyncpa [#allocation3], 1
    %s313 = scalar_lea.sflag [#allocation3], 1
    %314 = vsyncpa %s313, 1

// kernel: _lambda_.3
$region0: #{_lambda_.3}
  #allocation0 [shape = 'u32[]', space=smem, size = 0x4, offset = 0x4, fixed_abs, tag = 'smem constant byte address 0x4 - core index']
  #allocation1 [shape = 'u32[144,128]{1,0:T(1,128)}', space=vmem, size = 0x12000, scoped, tag = 'internal scratch']
  %s0 = inlined_call_operand.vmem [shape: f32[2,8,32], index: 0, kind: input, shape index: {}]
  %s1 = inlined_call_operand.vmem [shape: f32[8,8], index: 1, kind: input, shape index: {}]
  %s2 = inlined_call_operand.vmem [shape: f32[8,8], index: 2, kind: input, shape index: {}]
  %s3 = inlined_call_operand.vmem [shape: f32[1,32], index: 3, kind: input, shape index: {}]
  %s4 = inlined_call_operand.vmem [shape: bf16[32,64], index: 4, kind: input, shape index: {}]
  %s5 = inlined_call_operand.vmem [shape: f32[1,64], index: 5, kind: input, shape index: {}]
  %s6 = inlined_call_operand.vmem [shape: bf16[32,32], index: 6, kind: input, shape index: {}]
  %s7 = inlined_call_operand.vmem [shape: f32[1,32], index: 7, kind: input, shape index: {}]
  %s8 = inlined_call_operand.vmem [shape: bf16[32,128], index: 8, kind: input, shape index: {}]
  %s9 = inlined_call_operand.vmem [shape: bf16[64,32], index: 9, kind: input, shape index: {}]
  %s10 = inlined_call_operand.vmem [shape: f32[2,8,32], index: 10, kind: output, shape index: {}]
  %s11 = sld [smem:[#allocation0]]
  $region73: #{_lambda_.3} parent=0
    _
  %s13 = ssub.s32 1, %s11
  %s14 = scalar_select 0, %s13, %s11
  loop: start=0, step=1, limit=4
  $region2: #{_lambda_.3} parent=0 // loop_pre_header
    _
  $region3: #{_lambda_.3} parent=0 // loop_header
    %s16 = sphi 0, %s20
    %p17 = scmp.ge.s32.totalorder %s16, 4
    %s26 = sphi 0, %s28
    %s29 = sphi 0, %s26
    %s30 = sphi 0, %s29
    %s46 = sphi 0, %s30
    %s50 = sphi 0, %s50
    %s52 = sphi 0, %s50
    %s53 = sphi 0, %s52
    %s67 = sphi 0, %s53
    %s71 = sphi 0, %s71
    %s73 = sphi 0, %s71
    %s74 = sphi 0, %s73
    %s88 = sphi 0, %s74
    %s92 = sphi 0, %s92
    %s94 = sphi 0, %s92
    %s95 = sphi 0, %s94
    %s109 = sphi 0, %s95
    %s113 = sphi 0, %s113
    %s115 = sphi 0, %s113
    %s116 = sphi 0, %s115
    %s130 = sphi 0, %s116
    %s134 = sphi 0, %s134
    %s136 = sphi 0, %s134
    %s137 = sphi 0, %s136
    %s151 = sphi 0, %s137
    %s155 = sphi 0, %s155
    %s157 = sphi 0, %s155
    %s158 = sphi 0, %s157
    %s172 = sphi 0, %s158
    %s176 = sphi 0, %s176
    %s178 = sphi 0, %s176
    %s179 = sphi 0, %s178
    %s193 = sphi 0, %s179
    %s197 = sphi 0, %s197
    %s199 = sphi 0, %s197
    %s200 = sphi 0, %s199
    %s214 = sphi 0, %s200
    %s218 = sphi 0, %s218
    %s220 = sphi 0, %s218
    %s221 = sphi 0, %s220
    %s235 = sphi 0, %s221
    %s241 = sphi 0, %s243
    %s244 = sphi 0, %s241
    %s245 = sphi 0, %s244
    %s261 = sphi 0, %s245
  $region4: #{_lambda_.3} parent=0 // loop_header_branch
    %19 = sbr.rel (%p17) target = $region8
  $region5: #{_lambda_.3} parent=0 // loop_body
    %s21 = ssub.s32 %s16, 1
    %s22 = ssub.s32 %s16, 2
    %s23 = sadd.s32 %s16, 1
    %s24 = ssub.s32 %s16, %s23
    %p25 = scmp.eq.s32.totalorder %s24, 0
    %s27 = sadd.s32 %s26, 1
    %s28 = scalar_select %p25, %s26, %s27
    %p31 = pneg %p25
    %p32 = scmp.eq.s32.totalorder %s16, 1
    %p33 = por %p31, %p32
    %p34 = scmp.ne.s32.totalorder %s26, %s29
    %p35 = scmp.eq.s32.totalorder %s16, 0
    %p36 = por %p34, %p35
    %p37 = scmp.ne.s32.totalorder %s26, %s29
    %p38 = scmp.eq.s32.totalorder %s21, 1
    %p39 = por %p37, %p38
    %p40 = scmp.ne.s32.totalorder %s29, %s30
    %p41 = scmp.eq.s32.totalorder %s21, 0
    %p42 = por %p40, %p41
    %p43 = scmp.ne.s32.totalorder %s29, %s30
    %p44 = scmp.eq.s32.totalorder %s22, 1
    %p45 = por %p43, %p44
    %p47 = scmp.ne.s32.totalorder %s30, %s46
    %p48 = scmp.eq.s32.totalorder %s22, 0
    %p49 = por %p47, %p48
    %s51 = sadd.s32 %s50, 1
    %p54 = scmp.eq.s32.totalorder %s16, 1
    %p55 = scmp.ne.s32.totalorder %s50, %s52
    %p56 = scmp.eq.s32.totalorder %s16, 0
    %p57 = por %p55, %p56
    %p58 = scmp.ne.s32.totalorder %s50, %s52
    %p59 = scmp.eq.s32.totalorder %s21, 1
    %p60 = por %p58, %p59
    %p61 = scmp.ne.s32.totalorder %s52, %s53
    %p62 = scmp.eq.s32.totalorder %s21, 0
    %p63 = por %p61, %p62
    %p64 = scmp.ne.s32.totalorder %s52, %s53
    %p65 = scmp.eq.s32.totalorder %s22, 1
    %p66 = por %p64, %p65
    %p68 = scmp.ne.s32.totalorder %s53, %s67
    %p69 = scmp.eq.s32.totalorder %s22, 0
    %p70 = por %p68, %p69
    %s72 = sadd.s32 %s71, 1
    %p75 = scmp.eq.s32.totalorder %s16, 1
    %p76 = scmp.ne.s32.totalorder %s71, %s73
    %p77 = scmp.eq.s32.totalorder %s16, 0
    %p78 = por %p76, %p77
    %p79 = scmp.ne.s32.totalorder %s71, %s73
    %p80 = scmp.eq.s32.totalorder %s21, 1
    %p81 = por %p79, %p80
    %p82 = scmp.ne.s32.totalorder %s73, %s74
    %p83 = scmp.eq.s32.totalorder %s21, 0
    %p84 = por %p82, %p83
    %p85 = scmp.ne.s32.totalorder %s73, %s74
    %p86 = scmp.eq.s32.totalorder %s22, 1
    %p87 = por %p85, %p86
    %p89 = scmp.ne.s32.totalorder %s74, %s88
    %p90 = scmp.eq.s32.totalorder %s22, 0
    %p91 = por %p89, %p90
    %s93 = sadd.s32 %s92, 1
    %p96 = scmp.eq.s32.totalorder %s16, 1
    %p97 = scmp.ne.s32.totalorder %s92, %s94
    %p98 = scmp.eq.s32.totalorder %s16, 0
    %p99 = por %p97, %p98
    %p100 = scmp.ne.s32.totalorder %s92, %s94
    %p101 = scmp.eq.s32.totalorder %s21, 1
    %p102 = por %p100, %p101
    %p103 = scmp.ne.s32.totalorder %s94, %s95
    %p104 = scmp.eq.s32.totalorder %s21, 0
    %p105 = por %p103, %p104
    %p106 = scmp.ne.s32.totalorder %s94, %s95
    %p107 = scmp.eq.s32.totalorder %s22, 1
    %p108 = por %p106, %p107
    %p110 = scmp.ne.s32.totalorder %s95, %s109
    %p111 = scmp.eq.s32.totalorder %s22, 0
    %p112 = por %p110, %p111
    %s114 = sadd.s32 %s113, 1
    %p117 = scmp.eq.s32.totalorder %s16, 1
    %p118 = scmp.ne.s32.totalorder %s113, %s115
    %p119 = scmp.eq.s32.totalorder %s16, 0
    %p120 = por %p118, %p119
    %p121 = scmp.ne.s32.totalorder %s113, %s115
    %p122 = scmp.eq.s32.totalorder %s21, 1
    %p123 = por %p121, %p122
    %p124 = scmp.ne.s32.totalorder %s115, %s116
    %p125 = scmp.eq.s32.totalorder %s21, 0
    %p126 = por %p124, %p125
    %p127 = scmp.ne.s32.totalorder %s115, %s116
    %p128 = scmp.eq.s32.totalorder %s22, 1
    %p129 = por %p127, %p128
    %p131 = scmp.ne.s32.totalorder %s116, %s130
    %p132 = scmp.eq.s32.totalorder %s22, 0
    %p133 = por %p131, %p132
    %s135 = sadd.s32 %s134, 1
    %p138 = scmp.eq.s32.totalorder %s16, 1
    %p139 = scmp.ne.s32.totalorder %s134, %s136
    %p140 = scmp.eq.s32.totalorder %s16, 0
    %p141 = por %p139, %p140
    %p142 = scmp.ne.s32.totalorder %s134, %s136
    %p143 = scmp.eq.s32.totalorder %s21, 1
    %p144 = por %p142, %p143
    %p145 = scmp.ne.s32.totalorder %s136, %s137
    %p146 = scmp.eq.s32.totalorder %s21, 0
    %p147 = por %p145, %p146
    %p148 = scmp.ne.s32.totalorder %s136, %s137
    %p149 = scmp.eq.s32.totalorder %s22, 1
    %p150 = por %p148, %p149
    %p152 = scmp.ne.s32.totalorder %s137, %s151
    %p153 = scmp.eq.s32.totalorder %s22, 0
    %p154 = por %p152, %p153
    %s156 = sadd.s32 %s155, 1
    %p159 = scmp.eq.s32.totalorder %s16, 1
    %p160 = scmp.ne.s32.totalorder %s155, %s157
    %p161 = scmp.eq.s32.totalorder %s16, 0
    %p162 = por %p160, %p161
    %p163 = scmp.ne.s32.totalorder %s155, %s157
    %p164 = scmp.eq.s32.totalorder %s21, 1
    %p165 = por %p163, %p164
    %p166 = scmp.ne.s32.totalorder %s157, %s158
    %p167 = scmp.eq.s32.totalorder %s21, 0
    %p168 = por %p166, %p167
    %p169 = scmp.ne.s32.totalorder %s157, %s158
    %p170 = scmp.eq.s32.totalorder %s22, 1
    %p171 = por %p169, %p170
    %p173 = scmp.ne.s32.totalorder %s158, %s172
    %p174 = scmp.eq.s32.totalorder %s22, 0
    %p175 = por %p173, %p174
    %s177 = sadd.s32 %s176, 1
    %p180 = scmp.eq.s32.totalorder %s16, 1
    %p181 = scmp.ne.s32.totalorder %s176, %s178
    %p182 = scmp.eq.s32.totalorder %s16, 0
    %p183 = por %p181, %p182
    %p184 = scmp.ne.s32.totalorder %s176, %s178
    %p185 = scmp.eq.s32.totalorder %s21, 1
    %p186 = por %p184, %p185
    %p187 = scmp.ne.s32.totalorder %s178, %s179
    %p188 = scmp.eq.s32.totalorder %s21, 0
    %p189 = por %p187, %p188
    %p190 = scmp.ne.s32.totalorder %s178, %s179
    %p191 = scmp.eq.s32.totalorder %s22, 1
    %p192 = por %p190, %p191
    %p194 = scmp.ne.s32.totalorder %s179, %s193
    %p195 = scmp.eq.s32.totalorder %s22, 0
    %p196 = por %p194, %p195
    %s198 = sadd.s32 %s197, 1
    %p201 = scmp.eq.s32.totalorder %s16, 1
    %p202 = scmp.ne.s32.totalorder %s197, %s199
    %p203 = scmp.eq.s32.totalorder %s16, 0
    %p204 = por %p202, %p203
    %p205 = scmp.ne.s32.totalorder %s197, %s199
    %p206 = scmp.eq.s32.totalorder %s21, 1
    %p207 = por %p205, %p206
    %p208 = scmp.ne.s32.totalorder %s199, %s200
    %p209 = scmp.eq.s32.totalorder %s21, 0
    %p210 = por %p208, %p209
    %p211 = scmp.ne.s32.totalorder %s199, %s200
    %p212 = scmp.eq.s32.totalorder %s22, 1
    %p213 = por %p211, %p212
    %p215 = scmp.ne.s32.totalorder %s200, %s214
    %p216 = scmp.eq.s32.totalorder %s22, 0
    %p217 = por %p215, %p216
    %s219 = sadd.s32 %s218, 1
    %p222 = scmp.eq.s32.totalorder %s16, 1
    %p223 = scmp.ne.s32.totalorder %s218, %s220
    %p224 = scmp.eq.s32.totalorder %s16, 0
    %p225 = por %p223, %p224
    %p226 = scmp.ne.s32.totalorder %s218, %s220
    %p227 = scmp.eq.s32.totalorder %s21, 1
    %p228 = por %p226, %p227
    %p229 = scmp.ne.s32.totalorder %s220, %s221
    %p230 = scmp.eq.s32.totalorder %s21, 0
    %p231 = por %p229, %p230
    %p232 = scmp.ne.s32.totalorder %s220, %s221
    %p233 = scmp.eq.s32.totalorder %s22, 1
    %p234 = por %p232, %p233
    %p236 = scmp.ne.s32.totalorder %s221, %s235
    %p237 = scmp.eq.s32.totalorder %s22, 0
    %p238 = por %p236, %p237
    %s239 = ssub.s32 %s16, %s23
    %p240 = scmp.eq.s32.totalorder %s239, 0
    %s242 = sadd.s32 %s241, 1
    %s243 = scalar_select %p240, %s241, %s242
    %p246 = pneg %p240
    %p247 = scmp.eq.s32.totalorder %s16, 1
    %p248 = por %p246, %p247
    %p249 = scmp.ne.s32.totalorder %s241, %s244
    %p250 = scmp.eq.s32.totalorder %s16, 0
    %p251 = por %p249, %p250
    %p252 = scmp.ne.s32.totalorder %s241, %s244
    %p253 = scmp.eq.s32.totalorder %s21, 1
    %p254 = por %p252, %p253
    %p255 = scmp.ne.s32.totalorder %s244, %s245
    %p256 = scmp.eq.s32.totalorder %s21, 0
    %p257 = por %p255, %p256
    %p258 = scmp.ne.s32.totalorder %s244, %s245
    %p259 = scmp.eq.s32.totalorder %s22, 1
    %p260 = por %p258, %p259
    %p262 = scmp.ne.s32.totalorder %s245, %s261
    %p263 = scmp.eq.s32.totalorder %s22, 0
    %p264 = por %p262, %p263
    %p265 = scmp.le.s32.totalorder 1, %s16
    %p266 = scmp.lt.s32.totalorder %s16, 3
    %p267 = pnand %p265, %p266
    %p268 = pneg %p267
    // Predicated region
    $region9: #{_lambda_.3} parent=5 // pred_check
      _
    $region10: #{_lambda_.3} parent=5 // pred_check_branch
      %270 = sbr.rel (%p267) target = $region12
    $region11: #{_lambda_.3} parent=5 // pred_region
      %s271 = ssub.s32 %s16, 1
      // Predicated region
      $region13: #{_lambda_.3} parent=11 // pred_check
        %p272 = pneg %p63
      $region14: #{_lambda_.3} parent=11 // pred_check_branch
        %274 = sbr.rel (%p272) target = $region16
      $region15: #{_lambda_.3} parent=11 // pred_region
        _
      $region16: #{_lambda_.3} parent=11 // pred_fallthru
        _
      // Predicated region
      $region17: #{_lambda_.3} parent=11 // pred_check
        %p275 = pneg %p84
      $region18: #{_lambda_.3} parent=11 // pred_check_branch
        %277 = sbr.rel (%p275) target = $region20
      $region19: #{_lambda_.3} parent=11 // pred_region
        _
      $region20: #{_lambda_.3} parent=11 // pred_fallthru
        _
      // Predicated region
      $region21: #{_lambda_.3} parent=11 // pred_check
        %p278 = pneg %p105
      $region22: #{_lambda_.3} parent=11 // pred_check_branch
        %280 = sbr.rel (%p278) target = $region24
      $region23: #{_lambda_.3} parent=11 // pred_region
        _
      $region24: #{_lambda_.3} parent=11 // pred_fallthru
        _
      // Predicated region
      $region25: #{_lambda_.3} parent=11 // pred_check
        %p281 = pneg %p126
      $region26: #{_lambda_.3} parent=11 // pred_check_branch
        %283 = sbr.rel (%p281) target = $region28
      $region27: #{_lambda_.3} parent=11 // pred_region
        _
      $region28: #{_lambda_.3} parent=11 // pred_fallthru
        _
      // Predicated region
      $region29: #{_lambda_.3} parent=11 // pred_check
        %p284 = pneg %p147
      $region30: #{_lambda_.3} parent=11 // pred_check_branch
        %286 = sbr.rel (%p284) target = $region32
      $region31: #{_lambda_.3} parent=11 // pred_region
        _
      $region32: #{_lambda_.3} parent=11 // pred_fallthru
        _
      // Predicated region
      $region33: #{_lambda_.3} parent=11 // pred_check
        %p287 = pneg %p168
      $region34: #{_lambda_.3} parent=11 // pred_check_branch
        %289 = sbr.rel (%p287) target = $region36
      $region35: #{_lambda_.3} parent=11 // pred_region
        _
      $region36: #{_lambda_.3} parent=11 // pred_fallthru
        _
      // Predicated region
      $region37: #{_lambda_.3} parent=11 // pred_check
        %p290 = pneg %p189
      $region38: #{_lambda_.3} parent=11 // pred_check_branch
        %292 = sbr.rel (%p290) target = $region40
      $region39: #{_lambda_.3} parent=11 // pred_region
        _
      $region40: #{_lambda_.3} parent=11 // pred_fallthru
        _
      // Predicated region
      $region41: #{_lambda_.3} parent=11 // pred_check
        %p293 = pneg %p210
      $region42: #{_lambda_.3} parent=11 // pred_check_branch
        %295 = sbr.rel (%p293) target = $region44
      $region43: #{_lambda_.3} parent=11 // pred_region
        _
      $region44: #{_lambda_.3} parent=11 // pred_fallthru
        _
      // Predicated region
      $region45: #{_lambda_.3} parent=11 // pred_check
        %p296 = pneg %p231
      $region46: #{_lambda_.3} parent=11 // pred_check_branch
        %298 = sbr.rel (%p296) target = $region48
      $region47: #{_lambda_.3} parent=11 // pred_region
        _
      $region48: #{_lambda_.3} parent=11 // pred_fallthru
        _
    $region12: #{_lambda_.3} parent=5 // pred_fallthru
      _
    %p299 = scmp.lt.s32.totalorder %s16, 2
    // Predicated region
    $region49: #{_lambda_.3} parent=5 // pred_check
      %p300 = pneg %p299
    $region50: #{_lambda_.3} parent=5 // pred_check_branch
      %302 = sbr.rel (%p300) target = $region52
    $region51: #{_lambda_.3} parent=5 // pred_region
      // Predicated region
      $region53: #{_lambda_.3} parent=51 // pred_check
        %p303 = pneg %p36
      $region54: #{_lambda_.3} parent=51 // pred_check_branch
        %305 = sbr.rel (%p303) target = $region56
      $region55: #{_lambda_.3} parent=51 // pred_region
        %p306 = scmp.lt.s32.totalorder %s16, 1
        %s307 = scalar_select %p306, %s16, 1
        %s308 = smul.addr %s307, 8
        %s309 = scalar_lea.vmem %s0, %s308
      $region56: #{_lambda_.3} parent=51 // pred_fallthru
        _
    $region52: #{_lambda_.3} parent=5 // pred_fallthru
      _
    %p310 = scmp.le.s32.totalorder 1, %s16
    %p311 = scmp.lt.s32.totalorder %s16, 3
    %p312 = pnand %p310, %p311
    %p313 = pneg %p312
    // Predicated region
    $region57: #{_lambda_.3} parent=5 // pred_check
      _
    $region58: #{_lambda_.3} parent=5 // pred_check_branch
      %315 = sbr.rel (%p312) target = $region60
    $region59: #{_lambda_.3} parent=5 // pred_region
      %s316 = ssub.s32 %s16, 1
      %p317 = scmp.lt.s32.totalorder %s21, 1
      %s318 = scalar_select %p317, %s21, 1
      %s319 = smul.addr %s318, 8
      %s320 = scalar_lea.vmem %s0, %s319
      %p321 = pneg %p42
      %p322 = pneg %p39
      %p323 = pneg %p63
      %p324 = pneg %p60
      %p325 = pneg %p84
      %p326 = pneg %p81
      %p327 = pneg %p105
      %p328 = pneg %p102
      %p329 = pneg %p126
      %p330 = pneg %p123
      %p331 = pneg %p147
      %p332 = pneg %p144
      %p333 = pneg %p168
      %p334 = pneg %p165
      %p335 = pneg %p189
      %p336 = pneg %p186
      %p337 = pneg %p210
      %p338 = pneg %p207
      %p339 = pneg %p231
      %p340 = pneg %p228
      %p341 = pneg %p257
      %p342 = pneg %p254
      %p343 = scmp.lt.s32.totalorder %s21, 1
      %s344 = scalar_select %p343, %s21, 1
      %s345 = smul.addr %s344, 8
      %s346 = scalar_lea.vmem %s10, %s345
      %p347 = scmp.lt.s32.totalorder %s21, 1
      %s348 = scalar_select %p347, %s21, 1
      %s349 = smul.addr %s348, 8
      %s350 = scalar_lea.vmem %s0, %s349
      %p351 = scmp.lt.s32.totalorder %s21, 1
      %s352 = scalar_select %p351, %s21, 1
      %s353 = smul.addr %s352, 8
      %s354 = scalar_lea.vmem %s10, %s353
      %v356 = vld [vmem:[%s350] sm:$0xff]
      %v357 = vld [vmem:[%s3] sm:$0x1]
      %v358 = vmul.f32 %v356, %v356
      %vm359 = vcmask 261120
      %v360 = vsel %vm359, %v358, 0.0
      %361 = vadd.xlane.f32.xlu0 %v360
      %v362 = vpop.xlane.xlu0 %361
      %v363 = vrcp.pop 32.0
      %v364 = vmul.f32 %v362, %v363
      %v365 = vadd.f32 %v364, 1e-06
      %v366 = vrsqrt.pop %v365
      %v367 = vmul.f32 %v356, %v366
      %v369 = vlaneseq
      %v370 = vshrl.u32 %v369, 7
      %v371 = vsub.s32 0, %v370
      %v372 = vrot.slane %v357, %v371
      %v374 = vmul.f32 %v367, %v372
      %v375 = vpack.c.bf16 %v374, %v374
      %v376 = vld [vmem:[%s4] sm:$0xf]
      %v377 = vld [vmem:[%s4 + $0x4] sm:$0xf]
      %v378 = vld [vmem:[%s4 + $0x8] sm:$0xf]
      %v379 = vld [vmem:[%s4 + $0xc] sm:$0xf]
      %v380 = vld [vmem:[%s5] sm:$0x1]
      %v382 = vlaneseq
      %v383 = vshrl.u32 %v382, 7
      %v384 = vsub.s32 0, %v383
      %v385 = vrot.slane %v380, %v384
      %v391 = vunpack.c.l.b16 %v376
      %v392 = vunpack.c.l.b16 %v377
      %v393 = vunpack.c.l.b16 %v378
      %v394 = vunpack.c.l.b16 %v379
      %v395 = vpack.c.b16 %v392, %v391
      %v396 = vpack.c.b16 %v394, %v393
      %v400 = vsel %vm359, %v375, 0
      %402 = vmatprep.subr.bf16.mxu0 0
      %403 = vmatpush1.bf16.msra.mxu0 0
      %404 = vmatprep.subr.bf16.mxu0 0
      %405 = vmatpush1.bf16.msra.mxu0 0
      %406 = vmatprep.subr.bf16.mxu0 0
      %407 = vmatpush1.bf16.msra.mxu0 0
      %408 = vmatprep.subr.bf16.mxu0 0
      %409 = vmatpush1.bf16.msra.mxu0 0
      %410 = vmatprep.subr.bf16.mxu0 0
      %411 = vmatpush1.bf16.msra.mxu0 0
      %412 = vmatprep.subr.bf16.mxu0 0
      %413 = vmatpush1.bf16.msra.mxu0 0
      %414 = vmatprep.subr.bf16.mxu0 0
      %415 = vmatpush1.bf16.msra.mxu0 %v396
      %416 = vmatprep.subr.bf16.mxu0 0
      %417 = vmatpush1.bf16.msra.mxu0 %v395
      %418 = vmatprep.subr.bf16.mxu0 0
      %419 = vmatpush2.bf16.msra.mxu0 0
      %420 = vmatprep.subr.bf16.mxu0 0
      %421 = vmatpush2.bf16.msra.mxu0 0
      %422 = vmatprep.subr.bf16.mxu0 0
      %423 = vmatpush2.bf16.msra.mxu0 0
      %424 = vmatprep.subr.bf16.mxu0 0
      %425 = vmatpush2.bf16.msra.mxu0 0
      %426 = vmatprep.subr.bf16.mxu0 0
      %427 = vmatpush2.bf16.msra.mxu0 0
      %428 = vmatprep.subr.bf16.mxu0 0
      %429 = vmatpush2.bf16.msra.mxu0 0
      %430 = vmatprep.subr.bf16.mxu0 0
      %431 = vmatpush2.bf16.msra.mxu0 0
      %432 = vmatprep.subr.bf16.mxu0 0
      %433 = vmatpush2.bf16.msra.mxu0 0
      %434 = vmatprep.mubr.bf16.mxu0 0
      %435 = vmatmul.mubr.bf16.gmra.mxu0 %v400
      %v436 = vpop.f32.mrf.mxu0
      %v437 = vadd.f32 %v385, %v436
      %v438 = vpop.f32.mrf.mxu0
      %v439 = vpop.f32.mrf.mxu0
      %v440 = vpop.f32.mrf.mxu0
      %441 = vdwg.mxu0
      %443 = vrot.lane.b32.xlu0 %v437, 120
      %v444 = vpop.permute.xlu0 %443
      %446 = vrot.lane.b32.xlu0 %v437, 112
      %v447 = vpop.permute.xlu0 %446
      %449 = vrot.lane.b32.xlu0 %v437, 104
      %v450 = vpop.permute.xlu0 %449
      %v452 = vcombine.low %v437, %v447
      %v453 = vcombine.high %v437, %v447
      %v455 = vunpack.c.l.s4 1983009808
      %v456 = vunpack.c.0.s8 %v455
      %v457 = vlaneseq
      %v458 = vshrl.u32 %v457, 7
      %v459 = vsub.s32 %v456, %v458
      %v460 = vrot.slane %v452, %v459
      %v462 = vunpack.c.l.s4 1983009808
      %v463 = vunpack.c.0.s8 %v462
      %v464 = vlaneseq
      %v465 = vshrl.u32 %v464, 7
      %v466 = vsub.s32 %v463, %v465
      %v467 = vrot.slane %v453, %v466
      %v468 = vcombine.low %v444, %v450
      %v469 = vcombine.high %v444, %v450
      %v471 = vunpack.c.l.s4 1983009808
      %v472 = vunpack.c.0.s8 %v471
      %v473 = vlaneseq
      %v474 = vshrl.u32 %v473, 7
      %v475 = vsub.s32 %v472, %v474
      %v476 = vrot.slane %v468, %v475
      %v478 = vunpack.c.l.s4 1983009808
      %v479 = vunpack.c.0.s8 %v478
      %v480 = vlaneseq
      %v481 = vshrl.u32 %v480, 7
      %v482 = vsub.s32 %v479, %v481
      %v483 = vrot.slane %v469, %v482
      %v484 = vcombine.low %v460, %v476
      %v485 = vcombine.high %v460, %v476
      %v487 = vunpack.c.l.s4 1934713408
      %v488 = vunpack.c.0.s8 %v487
      %v489 = vlaneseq
      %v490 = vshrl.u32 %v489, 7
      %v491 = vsub.s32 %v488, %v490
      %v492 = vrot.slane %v484, %v491
      %v494 = vunpack.c.l.s4 1934713408
      %v495 = vunpack.c.0.s8 %v494
      %v496 = vlaneseq
      %v497 = vshrl.u32 %v496, 7
      %v498 = vsub.s32 %v495, %v497
      %v499 = vrot.slane %v485, %v498
      %v500 = vcombine.low %v467, %v483
      %v501 = vcombine.high %v467, %v483
      %v503 = vunpack.c.l.s4 1934713408
      %v504 = vunpack.c.0.s8 %v503
      %v505 = vlaneseq
      %v506 = vshrl.u32 %v505, 7
      %v507 = vsub.s32 %v504, %v506
      %v508 = vrot.slane %v500, %v507
      %v510 = vunpack.c.l.s4 1934713408
      %v511 = vunpack.c.0.s8 %v510
      %v512 = vlaneseq
      %v513 = vshrl.u32 %v512, 7
      %v514 = vsub.s32 %v511, %v513
      %v515 = vrot.slane %v501, %v514
      %v516 = vcombine.high %v492, 0.0
      %v517 = vcombine.high %v499, 0.0
      %v518 = vcombine.high %v508, 0.0
      %v519 = vcombine.high %v515, 0.0
      %v520 = vcombine.low %v492, %v499
      %v522 = vunpack.c.l.s4 1983009808
      %v523 = vunpack.c.0.s8 %v522
      %v524 = vlaneseq
      %v525 = vshrl.u32 %v524, 7
      %v526 = vsub.s32 %v523, %v525
      %v527 = vrot.slane %v520, %v526
      %v528 = vcombine.low %v516, %v517
      %v530 = vunpack.c.l.s4 1983009808
      %v531 = vunpack.c.0.s8 %v530
      %v532 = vlaneseq
      %v533 = vshrl.u32 %v532, 7
      %v534 = vsub.s32 %v531, %v533
      %v535 = vrot.slane %v528, %v534
      %v536 = vcombine.low %v508, %v515
      %v538 = vunpack.c.l.s4 1983009808
      %v539 = vunpack.c.0.s8 %v538
      %v540 = vlaneseq
      %v541 = vshrl.u32 %v540, 7
      %v542 = vsub.s32 %v539, %v541
      %v543 = vrot.slane %v536, %v542
      %v544 = vcombine.low %v518, %v519
      %v546 = vunpack.c.l.s4 1983009808
      %v547 = vunpack.c.0.s8 %v546
      %v548 = vlaneseq
      %v549 = vshrl.u32 %v548, 7
      %v550 = vsub.s32 %v547, %v549
      %v551 = vrot.slane %v544, %v550
      %v552 = vcombine.low %v527, %v535
      %v553 = vcombine.high %v527, %v535
      %v555 = vunpack.c.l.s4 1934713408
      %v556 = vunpack.c.0.s8 %v555
      %v557 = vlaneseq
      %v558 = vshrl.u32 %v557, 7
      %v559 = vsub.s32 %v556, %v558
      %v560 = vrot.slane %v552, %v559
      %v562 = vunpack.c.l.s4 1934713408
      %v563 = vunpack.c.0.s8 %v562
      %v564 = vlaneseq
      %v565 = vshrl.u32 %v564, 7
      %v566 = vsub.s32 %v563, %v565
      %v567 = vrot.slane %v553, %v566
      %v568 = vcombine.low %v543, %v551
      %v569 = vcombine.high %v543, %v551
      %v571 = vunpack.c.l.s4 1934713408
      %v572 = vunpack.c.0.s8 %v571
      %v573 = vlaneseq
      %v574 = vshrl.u32 %v573, 7
      %v575 = vsub.s32 %v572, %v574
      %v576 = vrot.slane %v568, %v575
      %v578 = vunpack.c.l.s4 1934713408
      %v579 = vunpack.c.0.s8 %v578
      %v580 = vlaneseq
      %v581 = vshrl.u32 %v580, 7
      %v582 = vsub.s32 %v579, %v581
      %v583 = vrot.slane %v569, %v582
      %v584 = vcombine.low %v560, %v576
      %v585 = vcombine.high %v560, %v576
      %v586 = vcombine.low %v567, %v583
      %v587 = vcombine.high %v567, %v583
      %588 = vrot.lane.b32.xlu0 %v437, 96
      %v589 = vpop.permute.xlu0 %588
      %590 = vrot.lane.b32.xlu0 %v444, 96
      %v591 = vpop.permute.xlu0 %590
      %v594 = vcombine.high %v589, 0.0
      %v596 = vunpack.c.l.s4 1983009808
      %v597 = vunpack.c.0.s8 %v596
      %v598 = vlaneseq
      %v599 = vshrl.u32 %v598, 7
      %v600 = vsub.s32 %v597, %v599
      %v601 = vrot.slane %v589, %v600
      %v603 = vunpack.c.l.s4 1983009808
      %v604 = vunpack.c.0.s8 %v603
      %v605 = vlaneseq
      %v606 = vshrl.u32 %v605, 7
      %v607 = vsub.s32 %v604, %v606
      %v608 = vrot.slane %v594, %v607
      %v609 = vcombine.high %v591, 0.0
      %v611 = vunpack.c.l.s4 1983009808
      %v612 = vunpack.c.0.s8 %v611
      %v613 = vlaneseq
      %v614 = vshrl.u32 %v613, 7
      %v615 = vsub.s32 %v612, %v614
      %v616 = vrot.slane %v591, %v615
      %v618 = vunpack.c.l.s4 1983009808
      %v619 = vunpack.c.0.s8 %v618
      %v620 = vlaneseq
      %v621 = vshrl.u32 %v620, 7
      %v622 = vsub.s32 %v619, %v621
      %v623 = vrot.slane %v609, %v622
      %v624 = vcombine.low %v601, %v616
      %v625 = vcombine.high %v601, %v616
      %v627 = vunpack.c.l.s4 1934713408
      %v628 = vunpack.c.0.s8 %v627
      %v629 = vlaneseq
      %v630 = vshrl.u32 %v629, 7
      %v631 = vsub.s32 %v628, %v630
      %v632 = vrot.slane %v624, %v631
      %v634 = vunpack.c.l.s4 1934713408
      %v635 = vunpack.c.0.s8 %v634
      %v636 = vlaneseq
      %v637 = vshrl.u32 %v636, 7
      %v638 = vsub.s32 %v635, %v637
      %v639 = vrot.slane %v625, %v638
      %v640 = vcombine.low %v608, %v623
      %v641 = vcombine.high %v608, %v623
      %v643 = vunpack.c.l.s4 1934713408
      %v644 = vunpack.c.0.s8 %v643
      %v645 = vlaneseq
      %v646 = vshrl.u32 %v645, 7
      %v647 = vsub.s32 %v644, %v646
      %v648 = vrot.slane %v640, %v647
      %v650 = vunpack.c.l.s4 1934713408
      %v651 = vunpack.c.0.s8 %v650
      %v652 = vlaneseq
      %v653 = vshrl.u32 %v652, 7
      %v654 = vsub.s32 %v651, %v653
      %v655 = vrot.slane %v641, %v654
      %v656 = vcombine.high %v632, 0.0
      %v657 = vcombine.high %v639, 0.0
      %v658 = vcombine.high %v648, 0.0
      %v659 = vcombine.high %v655, 0.0
      %v660 = vcombine.low %v632, %v639
      %v662 = vunpack.c.l.s4 1983009808
      %v663 = vunpack.c.0.s8 %v662
      %v664 = vlaneseq
      %v665 = vshrl.u32 %v664, 7
      %v666 = vsub.s32 %v663, %v665
      %v667 = vrot.slane %v660, %v666
      %v668 = vcombine.low %v656, %v657
      %v670 = vunpack.c.l.s4 1983009808
      %v671 = vunpack.c.0.s8 %v670
      %v672 = vlaneseq
      %v673 = vshrl.u32 %v672, 7
      %v674 = vsub.s32 %v671, %v673
      %v675 = vrot.slane %v668, %v674
      %v676 = vcombine.low %v648, %v655
      %v678 = vunpack.c.l.s4 1983009808
      %v679 = vunpack.c.0.s8 %v678
      %v680 = vlaneseq
      %v681 = vshrl.u32 %v680, 7
      %v682 = vsub.s32 %v679, %v681
      %v683 = vrot.slane %v676, %v682
      %v684 = vcombine.low %v658, %v659
      %v686 = vunpack.c.l.s4 1983009808
      %v687 = vunpack.c.0.s8 %v686
      %v688 = vlaneseq
      %v689 = vshrl.u32 %v688, 7
      %v690 = vsub.s32 %v687, %v689
      %v691 = vrot.slane %v684, %v690
      %v692 = vcombine.low %v667, %v675
      %v694 = vunpack.c.l.s4 1934713408
      %v695 = vunpack.c.0.s8 %v694
      %v696 = vlaneseq
      %v697 = vshrl.u32 %v696, 7
      %v698 = vsub.s32 %v695, %v697
      %v699 = vrot.slane %v692, %v698
      %v700 = vcombine.low %v683, %v691
      %v702 = vunpack.c.l.s4 1934713408
      %v703 = vunpack.c.0.s8 %v702
      %v704 = vlaneseq
      %v705 = vshrl.u32 %v704, 7
      %v706 = vsub.s32 %v703, %v705
      %v707 = vrot.slane %v700, %v706
      %v708 = vcombine.low %v699, %v707
      %v709 = vcombine.high %v699, %v707
      %710 = vrot.lane.b32.xlu0 %v437, 80
      %v711 = vpop.permute.xlu0 %710
      %712 = vrot.lane.b32.xlu0 %v444, 80
      %v713 = vpop.permute.xlu0 %712
      %v716 = vcombine.high %v711, 0.0
      %v718 = vunpack.c.l.s4 1983009808
      %v719 = vunpack.c.0.s8 %v718
      %v720 = vlaneseq
      %v721 = vshrl.u32 %v720, 7
      %v722 = vsub.s32 %v719, %v721
      %v723 = vrot.slane %v711, %v722
      %v725 = vunpack.c.l.s4 1983009808
      %v726 = vunpack.c.0.s8 %v725
      %v727 = vlaneseq
      %v728 = vshrl.u32 %v727, 7
      %v729 = vsub.s32 %v726, %v728
      %v730 = vrot.slane %v716, %v729
      %v731 = vcombine.high %v713, 0.0
      %v733 = vunpack.c.l.s4 1983009808
      %v734 = vunpack.c.0.s8 %v733
      %v735 = vlaneseq
      %v736 = vshrl.u32 %v735, 7
      %v737 = vsub.s32 %v734, %v736
      %v738 = vrot.slane %v713, %v737
      %v740 = vunpack.c.l.s4 1983009808
      %v741 = vunpack.c.0.s8 %v740
      %v742 = vlaneseq
      %v743 = vshrl.u32 %v742, 7
      %v744 = vsub.s32 %v741, %v743
      %v745 = vrot.slane %v731, %v744
      %v746 = vcombine.low %v723, %v738
      %v747 = vcombine.high %v723, %v738
      %v749 = vunpack.c.l.s4 1934713408
      %v750 = vunpack.c.0.s8 %v749
      %v751 = vlaneseq
      %v752 = vshrl.u32 %v751, 7
      %v753 = vsub.s32 %v750, %v752
      %v754 = vrot.slane %v746, %v753
      %v756 = vunpack.c.l.s4 1934713408
      %v757 = vunpack.c.0.s8 %v756
      %v758 = vlaneseq
      %v759 = vshrl.u32 %v758, 7
      %v760 = vsub.s32 %v757, %v759
      %v761 = vrot.slane %v747, %v760
      %v762 = vcombine.low %v730, %v745
      %v763 = vcombine.high %v730, %v745
      %v765 = vunpack.c.l.s4 1934713408
      %v766 = vunpack.c.0.s8 %v765
      %v767 = vlaneseq
      %v768 = vshrl.u32 %v767, 7
      %v769 = vsub.s32 %v766, %v768
      %v770 = vrot.slane %v762, %v769
      %v772 = vunpack.c.l.s4 1934713408
      %v773 = vunpack.c.0.s8 %v772
      %v774 = vlaneseq
      %v775 = vshrl.u32 %v774, 7
      %v776 = vsub.s32 %v773, %v775
      %v777 = vrot.slane %v763, %v776
      %v778 = vcombine.high %v754, 0.0
      %v779 = vcombine.high %v761, 0.0
      %v780 = vcombine.high %v770, 0.0
      %v781 = vcombine.high %v777, 0.0
      %v782 = vcombine.low %v754, %v761
      %v784 = vunpack.c.l.s4 1983009808
      %v785 = vunpack.c.0.s8 %v784
      %v786 = vlaneseq
      %v787 = vshrl.u32 %v786, 7
      %v788 = vsub.s32 %v785, %v787
      %v789 = vrot.slane %v782, %v788
      %v790 = vcombine.low %v778, %v779
      %v792 = vunpack.c.l.s4 1983009808
      %v793 = vunpack.c.0.s8 %v792
      %v794 = vlaneseq
      %v795 = vshrl.u32 %v794, 7
      %v796 = vsub.s32 %v793, %v795
      %v797 = vrot.slane %v790, %v796
      %v798 = vcombine.low %v770, %v777
      %v800 = vunpack.c.l.s4 1983009808
      %v801 = vunpack.c.0.s8 %v800
      %v802 = vlaneseq
      %v803 = vshrl.u32 %v802, 7
      %v804 = vsub.s32 %v801, %v803
      %v805 = vrot.slane %v798, %v804
      %v806 = vcombine.low %v780, %v781
      %v808 = vunpack.c.l.s4 1983009808
      %v809 = vunpack.c.0.s8 %v808
      %v810 = vlaneseq
      %v811 = vshrl.u32 %v810, 7
      %v812 = vsub.s32 %v809, %v811
      %v813 = vrot.slane %v806, %v812
      %v814 = vcombine.low %v789, %v797
      %v816 = vunpack.c.l.s4 1934713408
      %v817 = vunpack.c.0.s8 %v816
      %v818 = vlaneseq
      %v819 = vshrl.u32 %v818, 7
      %v820 = vsub.s32 %v817, %v819
      %v821 = vrot.slane %v814, %v820
      %v822 = vcombine.low %v805, %v813
      %v824 = vunpack.c.l.s4 1934713408
      %v825 = vunpack.c.0.s8 %v824
      %v826 = vlaneseq
      %v827 = vshrl.u32 %v826, 7
      %v828 = vsub.s32 %v825, %v827
      %v829 = vrot.slane %v822, %v828
      %v830 = vcombine.low %v821, %v829
      %v831 = vcombine.high %v821, %v829
      %v832 = vld [vmem:[%s1] sm:$0xff]
      %v833 = vld [vmem:[%s2] sm:$0xff]
      %v834 = vmul.f32 %v584, %v832
      %v835 = vmul.f32 %v585, %v832
      %v836 = vmul.f32 %v586, %v832
      %v837 = vmul.f32 %v587, %v832
      %vm838 = vcmask 1047616
      %839 = vrot.lane.b32.xlu0 %v584, 8
      %v840 = vpop.permute.xlu0 %839
      %v841 = vsel %vm838, %v840, %v584
      %842 = vrot.lane.b32.xlu0 %v585, 8
      %v843 = vpop.permute.xlu0 %842
      %v844 = vsel %vm838, %v843, %v585
      %845 = vrot.lane.b32.xlu0 %v586, 8
      %v846 = vpop.permute.xlu0 %845
      %v847 = vsel %vm838, %v846, %v586
      %848 = vrot.lane.b32.xlu0 %v587, 8
      %v849 = vpop.permute.xlu0 %848
      %v850 = vsel %vm838, %v849, %v587
      %851 = vrot.lane.b32.xlu0 %v841, 8
      %v852 = vpop.permute.xlu0 %851
      %853 = vrot.lane.b32.xlu0 %v844, 8
      %v854 = vpop.permute.xlu0 %853
      %855 = vrot.lane.b32.xlu0 %v847, 8
      %v856 = vpop.permute.xlu0 %855
      %857 = vrot.lane.b32.xlu0 %v850, 8
      %v858 = vpop.permute.xlu0 %857
      %v859 = vsel %vm838, %v852, %v584
      %v860 = vsel %vm838, %v854, %v585
      %v861 = vsel %vm838, %v856, %v586
      %v862 = vsel %vm838, %v858, %v587
      %864 = vrot.lane.b32.xlu0 %v833, 4
      %v865 = vpop.permute.xlu0 %864
      %v867 = vmul.f32 %v859, %v865
      %v868 = vmul.f32 %v860, %v865
      %v869 = vmul.f32 %v861, %v865
      %v870 = vmul.f32 %v862, %v865
      %875 = vrot.lane.b32.xlu0 %v867, 124
      %v876 = vpop.permute.xlu0 %875
      %877 = vrot.lane.b32.xlu0 %v868, 124
      %v878 = vpop.permute.xlu0 %877
      %879 = vrot.lane.b32.xlu0 %v869, 124
      %v880 = vpop.permute.xlu0 %879
      %881 = vrot.lane.b32.xlu0 %v870, 124
      %v882 = vpop.permute.xlu0 %881
      %v887 = vadd.f32 %v834, %v876
      %v888 = vadd.f32 %v835, %v878
      %v889 = vadd.f32 %v836, %v880
      %v890 = vadd.f32 %v837, %v882
      %v891 = vmul.f32 %v708, %v832
      %v892 = vmul.f32 %v709, %v832
      %893 = vrot.lane.b32.xlu0 %v708, 8
      %v894 = vpop.permute.xlu0 %893
      %v895 = vsel %vm838, %v894, %v708
      %896 = vrot.lane.b32.xlu0 %v709, 8
      %v897 = vpop.permute.xlu0 %896
      %v898 = vsel %vm838, %v897, %v709
      %899 = vrot.lane.b32.xlu0 %v895, 8
      %v900 = vpop.permute.xlu0 %899
      %901 = vrot.lane.b32.xlu0 %v898, 8
      %v902 = vpop.permute.xlu0 %901
      %v903 = vsel %vm838, %v900, %v708
      %v904 = vsel %vm838, %v902, %v709
      %v905 = vmul.f32 %v903, %v865
      %v906 = vmul.f32 %v904, %v865
      %909 = vrot.lane.b32.xlu0 %v905, 124
      %v910 = vpop.permute.xlu0 %909
      %911 = vrot.lane.b32.xlu0 %v906, 124
      %v912 = vpop.permute.xlu0 %911
      %v915 = vadd.f32 %v891, %v910
      %v916 = vadd.f32 %v892, %v912
      %v917 = vpack.c.bf16 %v887, %v887
      %v918 = vpack.c.bf16 %v888, %v888
      %v919 = vpack.c.bf16 %v889, %v889
      %v920 = vpack.c.bf16 %v890, %v890
      %v921 = vpack.c.bf16 %v915, %v915
      %v922 = vpack.c.bf16 %v916, %v916
      %vm923 = vcmask 64512
      %v925 = vsel %vm923, %v917, 0
      %v928 = vsel %vm923, %v921, 0
      %930 = vmatprep.subr.bf16.mxu0 0
      %931 = vmatpush1.bf16.xpose.msra.mxu0 0
      %932 = vmatprep.subr.bf16.mxu0 0
      %933 = vmatpush1.bf16.xpose.msra.mxu0 0
      %934 = vmatprep.subr.bf16.mxu0 0
      %935 = vmatpush1.bf16.xpose.msra.mxu0 0
      %936 = vmatprep.subr.bf16.mxu0 0
      %937 = vmatpush1.bf16.xpose.msra.mxu0 0
      %938 = vmatprep.subr.bf16.mxu0 0
      %939 = vmatpush1.bf16.xpose.msra.mxu0 0
      %940 = vmatprep.subr.bf16.mxu0 0
      %941 = vmatpush1.bf16.xpose.msra.mxu0 0
      %942 = vmatprep.subr.bf16.mxu0 0
      %943 = vmatpush1.bf16.xpose.msra.mxu0 0
      %944 = vmatprep.subr.bf16.mxu0 0
      %945 = vmatpush1.bf16.xpose.msra.mxu0 %v928
      %946 = vmatprep.subr.bf16.mxu0 0
      %947 = vmatpush2.bf16.xpose.msra.mxu0 0
      %948 = vmatprep.subr.bf16.mxu0 0
      %949 = vmatpush2.bf16.xpose.msra.mxu0 0
      %950 = vmatprep.subr.bf16.mxu0 0
      %951 = vmatpush2.bf16.xpose.msra.mxu0 0
      %952 = vmatprep.subr.bf16.mxu0 0
      %953 = vmatpush2.bf16.xpose.msra.mxu0 0
      %954 = vmatprep.subr.bf16.mxu0 0
      %955 = vmatpush2.bf16.xpose.msra.mxu0 0
      %956 = vmatprep.subr.bf16.mxu0 0
      %957 = vmatpush2.bf16.xpose.msra.mxu0 0
      %958 = vmatprep.subr.bf16.mxu0 0
      %959 = vmatpush2.bf16.xpose.msra.mxu0 0
      %960 = vmatprep.subr.bf16.mxu0 0
      %961 = vmatpush2.bf16.xpose.msra.mxu0 0
      %962 = vmatprep.mubr.bf16.mxu0 0
      %963 = vmatmul.mubr.bf16.gmra.mxu0 %v925
      %v964 = vpop.f32.mrf.mxu0
      %v965 = vadd.f32 0.0, %v964
      %v966 = vpop.f32.mrf.mxu0
      %v967 = vpop.f32.mrf.mxu0
      %v968 = vpop.f32.mrf.mxu0
      %969 = vdwg.mxu0
      %v971 = vsel %vm923, %v918, 0
      %973 = vmatprep.subr.bf16.mxu0 0
      %974 = vmatpush1.bf16.xpose.msra.mxu0 0
      %975 = vmatprep.subr.bf16.mxu0 0
      %976 = vmatpush1.bf16.xpose.msra.mxu0 0
      %977 = vmatprep.subr.bf16.mxu0 0
      %978 = vmatpush1.bf16.xpose.msra.mxu0 0
      %979 = vmatprep.subr.bf16.mxu0 0
      %980 = vmatpush1.bf16.xpose.msra.mxu0 0
      %981 = vmatprep.subr.bf16.mxu0 0
      %982 = vmatpush1.bf16.xpose.msra.mxu0 0
      %983 = vmatprep.subr.bf16.mxu0 0
      %984 = vmatpush1.bf16.xpose.msra.mxu0 0
      %985 = vmatprep.subr.bf16.mxu0 0
      %986 = vmatpush1.bf16.xpose.msra.mxu0 0
      %987 = vmatprep.subr.bf16.mxu0 0
      %988 = vmatpush1.bf16.xpose.msra.mxu0 %v928
      %989 = vmatprep.subr.bf16.mxu0 0
      %990 = vmatpush2.bf16.xpose.msra.mxu0 0
      %991 = vmatprep.subr.bf16.mxu0 0
      %992 = vmatpush2.bf16.xpose.msra.mxu0 0
      %993 = vmatprep.subr.bf16.mxu0 0
      %994 = vmatpush2.bf16.xpose.msra.mxu0 0
      %995 = vmatprep.subr.bf16.mxu0 0
      %996 = vmatpush2.bf16.xpose.msra.mxu0 0
      %997 = vmatprep.subr.bf16.mxu0 0
      %998 = vmatpush2.bf16.xpose.msra.mxu0 0
      %999 = vmatprep.subr.bf16.mxu0 0
      %1000 = vmatpush2.bf16.xpose.msra.mxu0 0
      %1001 = vmatprep.subr.bf16.mxu0 0
      %1002 = vmatpush2.bf16.xpose.msra.mxu0 0
      %1003 = vmatprep.subr.bf16.mxu0 0
      %1004 = vmatpush2.bf16.xpose.msra.mxu0 0
      %1005 = vmatprep.mubr.bf16.mxu0 0
      %1006 = vmatmul.mubr.bf16.gmra.mxu0 %v971
      %v1007 = vpop.f32.mrf.mxu0
      %v1008 = vadd.f32 0.0, %v1007
      %v1009 = vpop.f32.mrf.mxu0
      %v1010 = vpop.f32.mrf.mxu0
      %v1011 = vpop.f32.mrf.mxu0
      %1012 = vdwg.mxu0
      %v1014 = vsel %vm923, %v919, 0
      %v1017 = vsel %vm923, %v922, 0
      %1019 = vmatprep.subr.bf16.mxu0 0
      %1020 = vmatpush1.bf16.xpose.msra.mxu0 0
      %1021 = vmatprep.subr.bf16.mxu0 0
      %1022 = vmatpush1.bf16.xpose.msra.mxu0 0
      %1023 = vmatprep.subr.bf16.mxu0 0
      %1024 = vmatpush1.bf16.xpose.msra.mxu0 0
      %1025 = vmatprep.subr.bf16.mxu0 0
      %1026 = vmatpush1.bf16.xpose.msra.mxu0 0
      %1027 = vmatprep.subr.bf16.mxu0 0
      %1028 = vmatpush1.bf16.xpose.msra.mxu0 0
      %1029 = vmatprep.subr.bf16.mxu0 0
      %1030 = vmatpush1.bf16.xpose.msra.mxu0 0
      %1031 = vmatprep.subr.bf16.mxu0 0
      %1032 = vmatpush1.bf16.xpose.msra.mxu0 0
      %1033 = vmatprep.subr.bf16.mxu0 0
      %1034 = vmatpush1.bf16.xpose.msra.mxu0 %v1017
      %1035 = vmatprep.subr.bf16.mxu0 0
      %1036 = vmatpush2.bf16.xpose.msra.mxu0 0
      %1037 = vmatprep.subr.bf16.mxu0 0
      %1038 = vmatpush2.bf16.xpose.msra.mxu0 0
      %1039 = vmatprep.subr.bf16.mxu0 0
      %1040 = vmatpush2.bf16.xpose.msra.mxu0 0
      %1041 = vmatprep.subr.bf16.mxu0 0
      %1042 = vmatpush2.bf16.xpose.msra.mxu0 0
      %1043 = vmatprep.subr.bf16.mxu0 0
      %1044 = vmatpush2.bf16.xpose.msra.mxu0 0
      %1045 = vmatprep.subr.bf16.mxu0 0
      %1046 = vmatpush2.bf16.xpose.msra.mxu0 0
      %1047 = vmatprep.subr.bf16.mxu0 0
      %1048 = vmatpush2.bf16.xpose.msra.mxu0 0
      %1049 = vmatprep.subr.bf16.mxu0 0
      %1050 = vmatpush2.bf16.xpose.msra.mxu0 0
      %1051 = vmatprep.mubr.bf16.mxu0 0
      %1052 = vmatmul.mubr.bf16.gmra.mxu0 %v1014
      %v1053 = vpop.f32.mrf.mxu0
      %v1054 = vadd.f32 0.0, %v1053
      %v1055 = vpop.f32.mrf.mxu0
      %v1056 = vpop.f32.mrf.mxu0
      %v1057 = vpop.f32.mrf.mxu0
      %1058 = vdwg.mxu0
      %v1060 = vsel %vm923, %v920, 0
      %1062 = vmatprep.subr.bf16.mxu0 0
      %1063 = vmatpush1.bf16.xpose.msra.mxu0 0
      %1064 = vmatprep.subr.bf16.mxu0 0
      %1065 = vmatpush1.bf16.xpose.msra.mxu0 0
      %1066 = vmatprep.subr.bf16.mxu0 0
      %1067 = vmatpush1.bf16.xpose.msra.mxu0 0
      %1068 = vmatprep.subr.bf16.mxu0 0
      %1069 = vmatpush1.bf16.xpose.msra.mxu0 0
      %1070 = vmatprep.subr.bf16.mxu0 0
      %1071 = vmatpush1.bf16.xpose.msra.mxu0 0
      %1072 = vmatprep.subr.bf16.mxu0 0
      %1073 = vmatpush1.bf16.xpose.msra.mxu0 0
      %1074 = vmatprep.subr.bf16.mxu0 0
      %1075 = vmatpush1.bf16.xpose.msra.mxu0 0
      %1076 = vmatprep.subr.bf16.mxu0 0
      %1077 = vmatpush1.bf16.xpose.msra.mxu0 %v1017
      %1078 = vmatprep.subr.bf16.mxu0 0
      %1079 = vmatpush2.bf16.xpose.msra.mxu0 0
      %1080 = vmatprep.subr.bf16.mxu0 0
      %1081 = vmatpush2.bf16.xpose.msra.mxu0 0
      %1082 = vmatprep.subr.bf16.mxu0 0
      %1083 = vmatpush2.bf16.xpose.msra.mxu0 0
      %1084 = vmatprep.subr.bf16.mxu0 0
      %1085 = vmatpush2.bf16.xpose.msra.mxu0 0
      %1086 = vmatprep.subr.bf16.mxu0 0
      %1087 = vmatpush2.bf16.xpose.msra.mxu0 0
      %1088 = vmatprep.subr.bf16.mxu0 0
      %1089 = vmatpush2.bf16.xpose.msra.mxu0 0
      %1090 = vmatprep.subr.bf16.mxu0 0
      %1091 = vmatpush2.bf16.xpose.msra.mxu0 0
      %1092 = vmatprep.subr.bf16.mxu0 0
      %1093 = vmatpush2.bf16.xpose.msra.mxu0 0
      %1094 = vmatprep.mubr.bf16.mxu0 0
      %1095 = vmatmul.mubr.bf16.gmra.mxu0 %v1060
      %v1096 = vpop.f32.mrf.mxu0
      %v1097 = vadd.f32 0.0, %v1096
      %v1098 = vpop.f32.mrf.mxu0
      %v1099 = vpop.f32.mrf.mxu0
      %v1100 = vpop.f32.mrf.mxu0
      %1101 = vdwg.mxu0
      %v1102 = vlaneseq
      %v1103 = vshrl.u32 %v1102, 7
      %v1104 = vlaneseq
      %v1105 = vand.u32 %v1104, 127
      %vm1106 = vcmp.le.s32.totalorder %v1105, %v1103
      %v1107 = vsel %vm1106, 1, 0
      %vm1108 = vcmp.eq.s32.totalorder %v1107, 1
      %v1109 = vsel %vm1108, %v965, -1e+30
      %v1110 = vsel %vm1108, %v1008, -1e+30
      %v1111 = vsel %vm1108, %v1054, -1e+30
      %v1112 = vsel %vm1108, %v1097, -1e+30
      %v1113 = vsel %vm923, %v1109, -inf
      %1114 = vmax.xlane.f32.xlu0 %v1113
      %v1115 = vpop.xlane.xlu0 %1114
      %v1116 = vsel %vm923, %v1110, -inf
      %1117 = vmax.xlane.f32.xlu0 %v1116
      %v1118 = vpop.xlane.xlu0 %1117
      %v1119 = vsel %vm923, %v1111, -inf
      %1120 = vmax.xlane.f32.xlu0 %v1119
      %v1121 = vpop.xlane.xlu0 %1120
      %v1122 = vsel %vm923, %v1112, -inf
      %1123 = vmax.xlane.f32.xlu0 %v1122
      %v1124 = vpop.xlane.xlu0 %1123
      %v1125 = vsub.f32 %v1109, %v1115
      %v1126 = vsub.f32 %v1110, %v1118
      %v1127 = vsub.f32 %v1111, %v1121
      %v1128 = vsub.f32 %v1112, %v1124
      %v1129 = vmul.f32 %v1125, 1.442695
      %v1130 = vpow.pop %v1129
      %v1131 = vmul.f32 %v1126, 1.442695
      %v1132 = vpow.pop %v1131
      %v1133 = vmul.f32 %v1127, 1.442695
      %v1134 = vpow.pop %v1133
      %v1135 = vmul.f32 %v1128, 1.442695
      %v1136 = vpow.pop %v1135
      %v1137 = vsel %vm923, %v1130, 0.0
      %1138 = vadd.xlane.f32.xlu0 %v1137
      %v1139 = vpop.xlane.xlu0 %1138
      %v1140 = vsel %vm923, %v1132, 0.0
      %1141 = vadd.xlane.f32.xlu0 %v1140
      %v1142 = vpop.xlane.xlu0 %1141
      %v1143 = vsel %vm923, %v1134, 0.0
      %1144 = vadd.xlane.f32.xlu0 %v1143
      %v1145 = vpop.xlane.xlu0 %1144
      %v1146 = vsel %vm923, %v1136, 0.0
      %1147 = vadd.xlane.f32.xlu0 %v1146
      %v1148 = vpop.xlane.xlu0 %1147
      %v1149 = vpack.c.bf16 %v1130, %v1130
      %v1150 = vpack.c.bf16 %v1132, %v1132
      %v1151 = vpack.c.bf16 %v1134, %v1134
      %v1152 = vpack.c.bf16 %v1136, %v1136
      %v1153 = vpack.c.bf16 %v830, %v830
      %v1154 = vpack.c.bf16 %v831, %v831
      %v1156 = vsel %vm923, %v1149, 0
      %vm1158 = vcmask 1043456
      %v1160 = vsel %vm1158, %v1153, 0
      %1162 = vmatprep.subr.bf16.mxu0 0
      %1163 = vmatpush1.bf16.msra.mxu0 0
      %1164 = vmatprep.subr.bf16.mxu0 0
      %1165 = vmatpush1.bf16.msra.mxu0 0
      %1166 = vmatprep.subr.bf16.mxu0 0
      %1167 = vmatpush1.bf16.msra.mxu0 0
      %1168 = vmatprep.subr.bf16.mxu0 0
      %1169 = vmatpush1.bf16.msra.mxu0 0
      %1170 = vmatprep.subr.bf16.mxu0 0
      %1171 = vmatpush1.bf16.msra.mxu0 0
      %1172 = vmatprep.subr.bf16.mxu0 0
      %1173 = vmatpush1.bf16.msra.mxu0 0
      %1174 = vmatprep.subr.bf16.mxu0 0
      %1175 = vmatpush1.bf16.msra.mxu0 0
      %1176 = vmatprep.subr.bf16.mxu0 0
      %1177 = vmatpush1.bf16.msra.mxu0 %v1160
      %1178 = vmatprep.subr.bf16.mxu0 0
      %1179 = vmatpush2.bf16.msra.mxu0 0
      %1180 = vmatprep.subr.bf16.mxu0 0
      %1181 = vmatpush2.bf16.msra.mxu0 0
      %1182 = vmatprep.subr.bf16.mxu0 0
      %1183 = vmatpush2.bf16.msra.mxu0 0
      %1184 = vmatprep.subr.bf16.mxu0 0
      %1185 = vmatpush2.bf16.msra.mxu0 0
      %1186 = vmatprep.subr.bf16.mxu0 0
      %1187 = vmatpush2.bf16.msra.mxu0 0
      %1188 = vmatprep.subr.bf16.mxu0 0
      %1189 = vmatpush2.bf16.msra.mxu0 0
      %1190 = vmatprep.subr.bf16.mxu0 0
      %1191 = vmatpush2.bf16.msra.mxu0 0
      %1192 = vmatprep.subr.bf16.mxu0 0
      %1193 = vmatpush2.bf16.msra.mxu0 0
      %1194 = vmatprep.mubr.bf16.mxu0 0
      %1195 = vmatmul.mubr.bf16.gmra.mxu0 %v1156
      %v1196 = vpop.f32.mrf.mxu0
      %v1197 = vadd.f32 0.0, %v1196
      %v1198 = vpop.f32.mrf.mxu0
      %v1199 = vpop.f32.mrf.mxu0
      %v1200 = vpop.f32.mrf.mxu0
      %1201 = vdwg.mxu0
      %v1203 = vsel %vm923, %v1150, 0
      %1205 = vmatprep.subr.bf16.mxu0 0
      %1206 = vmatpush1.bf16.msra.mxu0 0
      %1207 = vmatprep.subr.bf16.mxu0 0
      %1208 = vmatpush1.bf16.msra.mxu0 0
      %1209 = vmatprep.subr.bf16.mxu0 0
      %1210 = vmatpush1.bf16.msra.mxu0 0
      %1211 = vmatprep.subr.bf16.mxu0 0
      %1212 = vmatpush1.bf16.msra.mxu0 0
      %1213 = vmatprep.subr.bf16.mxu0 0
      %1214 = vmatpush1.bf16.msra.mxu0 0
      %1215 = vmatprep.subr.bf16.mxu0 0
      %1216 = vmatpush1.bf16.msra.mxu0 0
      %1217 = vmatprep.subr.bf16.mxu0 0
      %1218 = vmatpush1.bf16.msra.mxu0 0
      %1219 = vmatprep.subr.bf16.mxu0 0
      %1220 = vmatpush1.bf16.msra.mxu0 %v1160
      %1221 = vmatprep.subr.bf16.mxu0 0
      %1222 = vmatpush2.bf16.msra.mxu0 0
      %1223 = vmatprep.subr.bf16.mxu0 0
      %1224 = vmatpush2.bf16.msra.mxu0 0
      %1225 = vmatprep.subr.bf16.mxu0 0
      %1226 = vmatpush2.bf16.msra.mxu0 0
      %1227 = vmatprep.subr.bf16.mxu0 0
      %1228 = vmatpush2.bf16.msra.mxu0 0
      %1229 = vmatprep.subr.bf16.mxu0 0
      %1230 = vmatpush2.bf16.msra.mxu0 0
      %1231 = vmatprep.subr.bf16.mxu0 0
      %1232 = vmatpush2.bf16.msra.mxu0 0
      %1233 = vmatprep.subr.bf16.mxu0 0
      %1234 = vmatpush2.bf16.msra.mxu0 0
      %1235 = vmatprep.subr.bf16.mxu0 0
      %1236 = vmatpush2.bf16.msra.mxu0 0
      %1237 = vmatprep.mubr.bf16.mxu0 0
      %1238 = vmatmul.mubr.bf16.gmra.mxu0 %v1203
      %v1239 = vpop.f32.mrf.mxu0
      %v1240 = vadd.f32 0.0, %v1239
      %v1241 = vpop.f32.mrf.mxu0
      %v1242 = vpop.f32.mrf.mxu0
      %v1243 = vpop.f32.mrf.mxu0
      %1244 = vdwg.mxu0
      %v1246 = vsel %vm923, %v1151, 0
      %v1249 = vsel %vm1158, %v1154, 0
      %1251 = vmatprep.subr.bf16.mxu0 0
      %1252 = vmatpush1.bf16.msra.mxu0 0
      %1253 = vmatprep.subr.bf16.mxu0 0
      %1254 = vmatpush1.bf16.msra.mxu0 0
      %1255 = vmatprep.subr.bf16.mxu0 0
      %1256 = vmatpush1.bf16.msra.mxu0 0
      %1257 = vmatprep.subr.bf16.mxu0 0
      %1258 = vmatpush1.bf16.msra.mxu0 0
      %1259 = vmatprep.subr.bf16.mxu0 0
      %1260 = vmatpush1.bf16.msra.mxu0 0
      %1261 = vmatprep.subr.bf16.mxu0 0
      %1262 = vmatpush1.bf16.msra.mxu0 0
      %1263 = vmatprep.subr.bf16.mxu0 0
      %1264 = vmatpush1.bf16.msra.mxu0 0
      %1265 = vmatprep.subr.bf16.mxu0 0
      %1266 = vmatpush1.bf16.msra.mxu0 %v1249
      %1267 = vmatprep.subr.bf16.mxu0 0
      %1268 = vmatpush2.bf16.msra.mxu0 0
      %1269 = vmatprep.subr.bf16.mxu0 0
      %1270 = vmatpush2.bf16.msra.mxu0 0
      %1271 = vmatprep.subr.bf16.mxu0 0
      %1272 = vmatpush2.bf16.msra.mxu0 0
      %1273 = vmatprep.subr.bf16.mxu0 0
      %1274 = vmatpush2.bf16.msra.mxu0 0
      %1275 = vmatprep.subr.bf16.mxu0 0
      %1276 = vmatpush2.bf16.msra.mxu0 0
      %1277 = vmatprep.subr.bf16.mxu0 0
      %1278 = vmatpush2.bf16.msra.mxu0 0
      %1279 = vmatprep.subr.bf16.mxu0 0
      %1280 = vmatpush2.bf16.msra.mxu0 0
      %1281 = vmatprep.subr.bf16.mxu0 0
      %1282 = vmatpush2.bf16.msra.mxu0 0
      %1283 = vmatprep.mubr.bf16.mxu0 0
      %1284 = vmatmul.mubr.bf16.gmra.mxu0 %v1246
      %v1285 = vpop.f32.mrf.mxu0
      %v1286 = vadd.f32 0.0, %v1285
      %v1287 = vpop.f32.mrf.mxu0
      %v1288 = vpop.f32.mrf.mxu0
      %v1289 = vpop.f32.mrf.mxu0
      %1290 = vdwg.mxu0
      %v1292 = vsel %vm923, %v1152, 0
      %1294 = vmatprep.subr.bf16.mxu0 0
      %1295 = vmatpush1.bf16.msra.mxu0 0
      %1296 = vmatprep.subr.bf16.mxu0 0
      %1297 = vmatpush1.bf16.msra.mxu0 0
      %1298 = vmatprep.subr.bf16.mxu0 0
      %1299 = vmatpush1.bf16.msra.mxu0 0
      %1300 = vmatprep.subr.bf16.mxu0 0
      %1301 = vmatpush1.bf16.msra.mxu0 0
      %1302 = vmatprep.subr.bf16.mxu0 0
      %1303 = vmatpush1.bf16.msra.mxu0 0
      %1304 = vmatprep.subr.bf16.mxu0 0
      %1305 = vmatpush1.bf16.msra.mxu0 0
      %1306 = vmatprep.subr.bf16.mxu0 0
      %1307 = vmatpush1.bf16.msra.mxu0 0
      %1308 = vmatprep.subr.bf16.mxu0 0
      %1309 = vmatpush1.bf16.msra.mxu0 %v1249
      %1310 = vmatprep.subr.bf16.mxu0 0
      %1311 = vmatpush2.bf16.msra.mxu0 0
      %1312 = vmatprep.subr.bf16.mxu0 0
      %1313 = vmatpush2.bf16.msra.mxu0 0
      %1314 = vmatprep.subr.bf16.mxu0 0
      %1315 = vmatpush2.bf16.msra.mxu0 0
      %1316 = vmatprep.subr.bf16.mxu0 0
      %1317 = vmatpush2.bf16.msra.mxu0 0
      %1318 = vmatprep.subr.bf16.mxu0 0
      %1319 = vmatpush2.bf16.msra.mxu0 0
      %1320 = vmatprep.subr.bf16.mxu0 0
      %1321 = vmatpush2.bf16.msra.mxu0 0
      %1322 = vmatprep.subr.bf16.mxu0 0
      %1323 = vmatpush2.bf16.msra.mxu0 0
      %1324 = vmatprep.subr.bf16.mxu0 0
      %1325 = vmatpush2.bf16.msra.mxu0 0
      %1326 = vmatprep.mubr.bf16.mxu0 0
      %1327 = vmatmul.mubr.bf16.gmra.mxu0 %v1292
      %v1328 = vpop.f32.mrf.mxu0
      %v1329 = vadd.f32 0.0, %v1328
      %v1330 = vpop.f32.mrf.mxu0
      %v1331 = vpop.f32.mrf.mxu0
      %v1332 = vpop.f32.mrf.mxu0
      %1333 = vdwg.mxu0
      %v1334 = vrcp.pop %v1139
      %v1335 = vrcp.pop %v1142
      %v1336 = vrcp.pop %v1145
      %v1337 = vrcp.pop %v1148
      %v1338 = vmul.f32 %v1197, %v1334
      %v1339 = vmul.f32 %v1240, %v1335
      %v1340 = vmul.f32 %v1286, %v1336
      %v1341 = vmul.f32 %v1329, %v1337
      %v1342 = vcombine.low %v1338, %v1340
      %v1343 = vcombine.high %v1338, %v1340
      %v1345 = vunpack.c.l.s4 1983009808
      %v1346 = vunpack.c.0.s8 %v1345
      %v1347 = vlaneseq
      %v1348 = vshrl.u32 %v1347, 7
      %v1349 = vsub.s32 %v1346, %v1348
      %v1350 = vrot.slane %v1342, %v1349
      %v1352 = vunpack.c.l.s4 1983009808
      %v1353 = vunpack.c.0.s8 %v1352
      %v1354 = vlaneseq
      %v1355 = vshrl.u32 %v1354, 7
      %v1356 = vsub.s32 %v1353, %v1355
      %v1357 = vrot.slane %v1343, %v1356
      %v1358 = vcombine.low %v1339, %v1341
      %v1359 = vcombine.high %v1339, %v1341
      %v1361 = vunpack.c.l.s4 1983009808
      %v1362 = vunpack.c.0.s8 %v1361
      %v1363 = vlaneseq
      %v1364 = vshrl.u32 %v1363, 7
      %v1365 = vsub.s32 %v1362, %v1364
      %v1366 = vrot.slane %v1358, %v1365
      %v1368 = vunpack.c.l.s4 1983009808
      %v1369 = vunpack.c.0.s8 %v1368
      %v1370 = vlaneseq
      %v1371 = vshrl.u32 %v1370, 7
      %v1372 = vsub.s32 %v1369, %v1371
      %v1373 = vrot.slane %v1359, %v1372
      %v1374 = vcombine.low %v1350, %v1366
      %v1375 = vcombine.high %v1350, %v1366
      %v1377 = vunpack.c.l.s4 1934713408
      %v1378 = vunpack.c.0.s8 %v1377
      %v1379 = vlaneseq
      %v1380 = vshrl.u32 %v1379, 7
      %v1381 = vsub.s32 %v1378, %v1380
      %v1382 = vrot.slane %v1374, %v1381
      %v1384 = vunpack.c.l.s4 1934713408
      %v1385 = vunpack.c.0.s8 %v1384
      %v1386 = vlaneseq
      %v1387 = vshrl.u32 %v1386, 7
      %v1388 = vsub.s32 %v1385, %v1387
      %v1389 = vrot.slane %v1375, %v1388
      %v1390 = vcombine.low %v1357, %v1373
      %v1391 = vcombine.high %v1357, %v1373
      %v1393 = vunpack.c.l.s4 1934713408
      %v1394 = vunpack.c.0.s8 %v1393
      %v1395 = vlaneseq
      %v1396 = vshrl.u32 %v1395, 7
      %v1397 = vsub.s32 %v1394, %v1396
      %v1398 = vrot.slane %v1390, %v1397
      %v1400 = vunpack.c.l.s4 1934713408
      %v1401 = vunpack.c.0.s8 %v1400
      %v1402 = vlaneseq
      %v1403 = vshrl.u32 %v1402, 7
      %v1404 = vsub.s32 %v1401, %v1403
      %v1405 = vrot.slane %v1391, %v1404
      %v1406 = vcombine.high %v1382, 0.0
      %v1407 = vcombine.high %v1389, 0.0
      %v1408 = vcombine.high %v1398, 0.0
      %v1409 = vcombine.high %v1405, 0.0
      %v1410 = vcombine.low %v1382, %v1389
      %v1412 = vunpack.c.l.s4 1983009808
      %v1413 = vunpack.c.0.s8 %v1412
      %v1414 = vlaneseq
      %v1415 = vshrl.u32 %v1414, 7
      %v1416 = vsub.s32 %v1413, %v1415
      %v1417 = vrot.slane %v1410, %v1416
      %v1418 = vcombine.low %v1406, %v1407
      %v1420 = vunpack.c.l.s4 1983009808
      %v1421 = vunpack.c.0.s8 %v1420
      %v1422 = vlaneseq
      %v1423 = vshrl.u32 %v1422, 7
      %v1424 = vsub.s32 %v1421, %v1423
      %v1425 = vrot.slane %v1418, %v1424
      %v1426 = vcombine.low %v1398, %v1405
      %v1428 = vunpack.c.l.s4 1983009808
      %v1429 = vunpack.c.0.s8 %v1428
      %v1430 = vlaneseq
      %v1431 = vshrl.u32 %v1430, 7
      %v1432 = vsub.s32 %v1429, %v1431
      %v1433 = vrot.slane %v1426, %v1432
      %v1434 = vcombine.low %v1408, %v1409
      %v1436 = vunpack.c.l.s4 1983009808
      %v1437 = vunpack.c.0.s8 %v1436
      %v1438 = vlaneseq
      %v1439 = vshrl.u32 %v1438, 7
      %v1440 = vsub.s32 %v1437, %v1439
      %v1441 = vrot.slane %v1434, %v1440
      %v1442 = vcombine.low %v1417, %v1425
      %v1443 = vcombine.high %v1417, %v1425
      %v1445 = vunpack.c.l.s4 1934713408
      %v1446 = vunpack.c.0.s8 %v1445
      %v1447 = vlaneseq
      %v1448 = vshrl.u32 %v1447, 7
      %v1449 = vsub.s32 %v1446, %v1448
      %v1450 = vrot.slane %v1442, %v1449
      %v1452 = vunpack.c.l.s4 1934713408
      %v1453 = vunpack.c.0.s8 %v1452
      %v1454 = vlaneseq
      %v1455 = vshrl.u32 %v1454, 7
      %v1456 = vsub.s32 %v1453, %v1455
      %v1457 = vrot.slane %v1443, %v1456
      %v1458 = vcombine.low %v1433, %v1441
      %v1459 = vcombine.high %v1433, %v1441
      %v1461 = vunpack.c.l.s4 1934713408
      %v1462 = vunpack.c.0.s8 %v1461
      %v1463 = vlaneseq
      %v1464 = vshrl.u32 %v1463, 7
      %v1465 = vsub.s32 %v1462, %v1464
      %v1466 = vrot.slane %v1458, %v1465
      %v1468 = vunpack.c.l.s4 1934713408
      %v1469 = vunpack.c.0.s8 %v1468
      %v1470 = vlaneseq
      %v1471 = vshrl.u32 %v1470, 7
      %v1472 = vsub.s32 %v1469, %v1471
      %v1473 = vrot.slane %v1459, %v1472
      %v1474 = vcombine.low %v1450, %v1466
      %v1475 = vcombine.high %v1450, %v1466
      %v1476 = vcombine.low %v1457, %v1473
      %v1477 = vcombine.high %v1457, %v1473
      %1479 = vrot.lane.b32.xlu0 %v1475, 8
      %v1480 = vpop.permute.xlu0 %1479
      %1483 = vrot.lane.b32.xlu0 %v1476, 16
      %v1484 = vpop.permute.xlu0 %1483
      %1487 = vrot.lane.b32.xlu0 %v1477, 24
      %v1488 = vpop.permute.xlu0 %1487
      %v1490 = vsel %vm923, %v1474, %v1480
      %vm1491 = vcmask 130048
      %v1492 = vsel %vm1491, %v1490, %v1484
      %vm1493 = vcmask 195584
      %v1494 = vsel %vm1493, %v1492, %v1488
      %v1495 = vpack.c.bf16 %v1494, %v1494
      %v1496 = vld [vmem:[%s6] sm:$0xf]
      %v1497 = vld [vmem:[%s6 + $0x4] sm:$0xf]
      %v1498 = vld [vmem:[%s6 + $0x8] sm:$0xf]
      %v1499 = vld [vmem:[%s6 + $0xc] sm:$0xf]
      %v1504 = vunpack.c.l.b16 %v1496
      %v1505 = vunpack.c.l.b16 %v1497
      %v1506 = vunpack.c.l.b16 %v1498
      %v1507 = vunpack.c.l.b16 %v1499
      %v1508 = vpack.c.b16 %v1505, %v1504
      %v1509 = vpack.c.b16 %v1507, %v1506
      %v1513 = vsel %vm359, %v1495, 0
      %1515 = vmatprep.subr.bf16.mxu0 0
      %1516 = vmatpush1.bf16.msra.mxu0 0
      %1517 = vmatprep.subr.bf16.mxu0 0
      %1518 = vmatpush1.bf16.msra.mxu0 0
      %1519 = vmatprep.subr.bf16.mxu0 0
      %1520 = vmatpush1.bf16.msra.mxu0 0
      %1521 = vmatprep.subr.bf16.mxu0 0
      %1522 = vmatpush1.bf16.msra.mxu0 0
      %1523 = vmatprep.subr.bf16.mxu0 0
      %1524 = vmatpush1.bf16.msra.mxu0 0
      %1525 = vmatprep.subr.bf16.mxu0 0
      %1526 = vmatpush1.bf16.msra.mxu0 0
      %1527 = vmatprep.subr.bf16.mxu0 0
      %1528 = vmatpush1.bf16.msra.mxu0 %v1509
      %1529 = vmatprep.subr.bf16.mxu0 0
      %1530 = vmatpush1.bf16.msra.mxu0 %v1508
      %1531 = vmatprep.subr.bf16.mxu0 0
      %1532 = vmatpush2.bf16.msra.mxu0 0
      %1533 = vmatprep.subr.bf16.mxu0 0
      %1534 = vmatpush2.bf16.msra.mxu0 0
      %1535 = vmatprep.subr.bf16.mxu0 0
      %1536 = vmatpush2.bf16.msra.mxu0 0
      %1537 = vmatprep.subr.bf16.mxu0 0
      %1538 = vmatpush2.bf16.msra.mxu0 0
      %1539 = vmatprep.subr.bf16.mxu0 0
      %1540 = vmatpush2.bf16.msra.mxu0 0
      %1541 = vmatprep.subr.bf16.mxu0 0
      %1542 = vmatpush2.bf16.msra.mxu0 0
      %1543 = vmatprep.subr.bf16.mxu0 0
      %1544 = vmatpush2.bf16.msra.mxu0 0
      %1545 = vmatprep.subr.bf16.mxu0 0
      %1546 = vmatpush2.bf16.msra.mxu0 0
      %1547 = vmatprep.mubr.bf16.mxu0 0
      %1548 = vmatmul.mubr.bf16.gmra.mxu0 %v1513
      %v1549 = vpop.f32.mrf.mxu0
      %v1550 = vadd.f32 0.0, %v1549
      %v1551 = vpop.f32.mrf.mxu0
      %v1552 = vpop.f32.mrf.mxu0
      %v1553 = vpop.f32.mrf.mxu0
      %1554 = vdwg.mxu0
      %v1555 = vadd.f32 %v356, %v1550
      %v1556 = vld [vmem:[%s7] sm:$0x1]
      %v1557 = vmul.f32 %v1555, %v1555
      %v1558 = vsel %vm359, %v1557, 0.0
      %1559 = vadd.xlane.f32.xlu0 %v1558
      %v1560 = vpop.xlane.xlu0 %1559
      %v1561 = vmul.f32 %v1560, %v363
      %v1562 = vadd.f32 %v1561, 1e-06
      %v1563 = vrsqrt.pop %v1562
      %v1564 = vmul.f32 %v1555, %v1563
      %v1566 = vlaneseq
      %v1567 = vshrl.u32 %v1566, 7
      %v1568 = vsub.s32 0, %v1567
      %v1569 = vrot.slane %v1556, %v1568
      %v1571 = vmul.f32 %v1564, %v1569
      %v1572 = vpack.c.bf16 %v1571, %v1571
      %v1573 = vld [vmem:[%s8] sm:$0xf]
      %v1574 = vld [vmem:[%s8 + $0x4] sm:$0xf]
      %v1575 = vld [vmem:[%s8 + $0x8] sm:$0xf]
      %v1576 = vld [vmem:[%s8 + $0xc] sm:$0xf]
      %v1581 = vunpack.c.l.b16 %v1573
      %v1582 = vunpack.c.l.b16 %v1574
      %v1583 = vunpack.c.l.b16 %v1575
      %v1584 = vunpack.c.l.b16 %v1576
      %v1585 = vpack.c.b16 %v1582, %v1581
      %v1586 = vpack.c.b16 %v1584, %v1583
      %v1590 = vsel %vm359, %v1572, 0
      %1592 = vmatprep.subr.bf16.mxu0 0
      %1593 = vmatpush1.bf16.msra.mxu0 0
      %1594 = vmatprep.subr.bf16.mxu0 0
      %1595 = vmatpush1.bf16.msra.mxu0 0
      %1596 = vmatprep.subr.bf16.mxu0 0
      %1597 = vmatpush1.bf16.msra.mxu0 0
      %1598 = vmatprep.subr.bf16.mxu0 0
      %1599 = vmatpush1.bf16.msra.mxu0 0
      %1600 = vmatprep.subr.bf16.mxu0 0
      %1601 = vmatpush1.bf16.msra.mxu0 0
      %1602 = vmatprep.subr.bf16.mxu0 0
      %1603 = vmatpush1.bf16.msra.mxu0 0
      %1604 = vmatprep.subr.bf16.mxu0 0
      %1605 = vmatpush1.bf16.msra.mxu0 %v1586
      %1606 = vmatprep.subr.bf16.mxu0 0
      %1607 = vmatpush1.bf16.msra.mxu0 %v1585
      %1608 = vmatprep.subr.bf16.mxu0 0
      %1609 = vmatpush2.bf16.msra.mxu0 0
      %1610 = vmatprep.subr.bf16.mxu0 0
      %1611 = vmatpush2.bf16.msra.mxu0 0
      %1612 = vmatprep.subr.bf16.mxu0 0
      %1613 = vmatpush2.bf16.msra.mxu0 0
      %1614 = vmatprep.subr.bf16.mxu0 0
      %1615 = vmatpush2.bf16.msra.mxu0 0
      %1616 = vmatprep.subr.bf16.mxu0 0
      %1617 = vmatpush2.bf16.msra.mxu0 0
      %1618 = vmatprep.subr.bf16.mxu0 0
      %1619 = vmatpush2.bf16.msra.mxu0 0
      %1620 = vmatprep.subr.bf16.mxu0 0
      %1621 = vmatpush2.bf16.msra.mxu0 0
      %1622 = vmatprep.subr.bf16.mxu0 0
      %1623 = vmatpush2.bf16.msra.mxu0 0
      %1624 = vmatprep.mubr.bf16.mxu0 0
      %1625 = vmatmul.mubr.bf16.gmra.mxu0 %v1590
      %v1626 = vpop.f32.mrf.mxu0
      %v1627 = vadd.f32 0.0, %v1626
      %v1628 = vpop.f32.mrf.mxu0
      %v1629 = vpop.f32.mrf.mxu0
      %v1630 = vpop.f32.mrf.mxu0
      %1631 = vdwg.mxu0
      %v1632 = vxor.u32 %v1627, 2147483648
      %v1633 = vmul.f32 %v1632, 1.442695
      %v1634 = vpow.pop %v1633
      %v1635 = vadd.f32 %v1634, 1.0
      %v1636 = vrcp.pop %v1635
      %v1637 = vmul.f32 1.0, %v1636
      %v1638 = vmul.f32 %v1627, %v1637
      %1640 = vrot.lane.b32.xlu0 %v1627, 64
      %v1641 = vpop.permute.xlu0 %1640
      %v1643 = vmul.f32 %v1638, %v1641
      %v1644 = vpack.c.bf16 %v1643, %v1643
      %v1645 = vld [vmem:[%s9] sm:$0xf]
      %v1646 = vld [vmem:[%s9 + $0x4] sm:$0xf]
      %v1647 = vld [vmem:[%s9 + $0x8] sm:$0xf]
      %v1648 = vld [vmem:[%s9 + $0xc] sm:$0xf]
      %v1649 = vld [vmem:[%s9 + $0x10] sm:$0xf]
      %v1650 = vld [vmem:[%s9 + $0x14] sm:$0xf]
      %v1651 = vld [vmem:[%s9 + $0x18] sm:$0xf]
      %v1652 = vld [vmem:[%s9 + $0x1c] sm:$0xf]
      %v1661 = vunpack.c.l.b16 %v1645
      %v1662 = vunpack.c.l.b16 %v1646
      %v1663 = vunpack.c.l.b16 %v1647
      %v1664 = vunpack.c.l.b16 %v1648
      %v1665 = vunpack.c.l.b16 %v1649
      %v1666 = vunpack.c.l.b16 %v1650
      %v1667 = vunpack.c.l.b16 %v1651
      %v1668 = vunpack.c.l.b16 %v1652
      %v1669 = vpack.c.b16 %v1662, %v1661
      %v1670 = vpack.c.b16 %v1664, %v1663
      %v1671 = vpack.c.b16 %v1666, %v1665
      %v1672 = vpack.c.b16 %v1668, %v1667
      %vm1677 = vcmask 523264
      %v1679 = vsel %vm1677, %v1644, 0
      %1681 = vmatprep.subr.bf16.mxu0 0
      %1682 = vmatpush1.bf16.msra.mxu0 0
      %1683 = vmatprep.subr.bf16.mxu0 0
      %1684 = vmatpush1.bf16.msra.mxu0 0
      %1685 = vmatprep.subr.bf16.mxu0 0
      %1686 = vmatpush1.bf16.msra.mxu0 0
      %1687 = vmatprep.subr.bf16.mxu0 0
      %1688 = vmatpush1.bf16.msra.mxu0 0
      %1689 = vmatprep.subr.bf16.mxu0 0
      %1690 = vmatpush1.bf16.msra.mxu0 %v1672
      %1691 = vmatprep.subr.bf16.mxu0 0
      %1692 = vmatpush1.bf16.msra.mxu0 %v1671
      %1693 = vmatprep.subr.bf16.mxu0 0
      %1694 = vmatpush1.bf16.msra.mxu0 %v1670
      %1695 = vmatprep.subr.bf16.mxu0 0
      %1696 = vmatpush1.bf16.msra.mxu0 %v1669
      %1697 = vmatprep.subr.bf16.mxu0 0
      %1698 = vmatpush2.bf16.msra.mxu0 0
      %1699 = vmatprep.subr.bf16.mxu0 0
      %1700 = vmatpush2.bf16.msra.mxu0 0
      %1701 = vmatprep.subr.bf16.mxu0 0
      %1702 = vmatpush2.bf16.msra.mxu0 0
      %1703 = vmatprep.subr.bf16.mxu0 0
      %1704 = vmatpush2.bf16.msra.mxu0 0
      %1705 = vmatprep.subr.bf16.mxu0 0
      %1706 = vmatpush2.bf16.msra.mxu0 0
      %1707 = vmatprep.subr.bf16.mxu0 0
      %1708 = vmatpush2.bf16.msra.mxu0 0
      %1709 = vmatprep.subr.bf16.mxu0 0
      %1710 = vmatpush2.bf16.msra.mxu0 0
      %1711 = vmatprep.subr.bf16.mxu0 0
      %1712 = vmatpush2.bf16.msra.mxu0 0
      %1713 = vmatprep.mubr.bf16.mxu0 0
      %1714 = vmatmul.mubr.bf16.gmra.mxu0 %v1679
      %v1715 = vpop.f32.mrf.mxu0
      %v1716 = vadd.f32 0.0, %v1715
      %v1717 = vpop.f32.mrf.mxu0
      %v1718 = vpop.f32.mrf.mxu0
      %v1719 = vpop.f32.mrf.mxu0
      %1720 = vdwg.mxu0
      %v1721 = vadd.f32 %v1555, %v1716
      %1722 = vst.msk [vmem:[%s354] sm:$0xff] %vm359, %v1721
      %p1723 = scmp.lt.s32.totalorder %s21, 1
      %s1724 = scalar_select %p1723, %s21, 1
      %s1725 = smul.addr %s1724, 8
      %s1726 = scalar_lea.vmem %s10, %s1725
      // Predicated region
      $region61: #{_lambda_.3} parent=59 // pred_check
        %p1727 = pneg %p254
      $region62: #{_lambda_.3} parent=59 // pred_check_branch
        %1729 = sbr.rel (%p1727) target = $region64
      $region63: #{_lambda_.3} parent=59 // pred_region
        _
      $region64: #{_lambda_.3} parent=59 // pred_fallthru
        _
    $region60: #{_lambda_.3} parent=5 // pred_fallthru
      _
    %p1730 = scmp.le.s32.totalorder 2, %s16
    // Predicated region
    $region65: #{_lambda_.3} parent=5 // pred_check
      %p1731 = pneg %p1730
    $region66: #{_lambda_.3} parent=5 // pred_check_branch
      %1733 = sbr.rel (%p1731) target = $region68
    $region67: #{_lambda_.3} parent=5 // pred_region
      %s1734 = ssub.s32 %s16, 2
      // Predicated region
      $region69: #{_lambda_.3} parent=67 // pred_check
        %p1735 = pneg %p260
      $region70: #{_lambda_.3} parent=67 // pred_check_branch
        %1737 = sbr.rel (%p1735) target = $region72
      $region71: #{_lambda_.3} parent=67 // pred_region
        %p1738 = scmp.lt.s32.totalorder %s22, 1
        %s1739 = scalar_select %p1738, %s22, 1
        %s1740 = smul.addr %s1739, 8
        %s1741 = scalar_lea.vmem %s10, %s1740
      $region72: #{_lambda_.3} parent=67 // pred_fallthru
        _
    $region68: #{_lambda_.3} parent=5 // pred_fallthru
      _
  $region6: #{_lambda_.3} parent=0 // loop_footer
    %s20 = sadd.s32 1, %s16
  $region7: #{_lambda_.3} parent=0 // loop_footer_branch
    %15 = sbr.rel target = $region3
  $region8: #{_lambda_.3} parent=0 // loop_exit
    _

</llo_original>
